<compile_context>
chip_gen: v7x
topology: tpu7x:2x2x1
jax: 0.10.0
libtpu: 0.0.40
codegen_flags: <defaults>
</compile_context>

<pallas_src>
import functools

import jax
import jax.numpy as jnp
from jax.experimental import pallas as pl
from jax.experimental.pallas import tpu as pltpu


# ---------------------------------------------------------------------------
# Kernel 1: rotated head   t[b, :] = h[b, :] @ r[b, :, :]
# ---------------------------------------------------------------------------
def rotate_t_kernel(h_ref, r_ref, t_ref):
    # h_ref: (Bt, D) f32   gathered head embeddings
    # r_ref: (Bt, D, D) f32 gathered relation matrices
    # t_ref: (Bt, D)       rotated head, stored directly in the scoring dtype
    h = h_ref[...]
    r = r_ref[...]
    # t[b, e] = sum_d h[b, d] * r[b, d, e]  (VPU multiply + sublane reduce).
    # This kernel is a tiny fraction of total work (2*B*D*D vs 2*B*D*NE flops),
    # so the VPU path with a small batch tile is fine.
    t = jnp.sum(h[:, :, None] * r, axis=1)
    t_ref[...] = t.astype(t_ref.dtype)


# ---------------------------------------------------------------------------
# Kernel 2: scoring   x = sigmoid(t @ E^T + b)
# ---------------------------------------------------------------------------
def score_kernel(t_ref, e_ref, b_ref, o_ref):
    # t_ref: (Bt, D)    bf16 rotated head
    # e_ref: (NEt, D)   bf16 entity-table tile
    # b_ref: (1, NEt)   f32 per-entity bias tile
    # o_ref: (Bt, NEt)  scores (out dtype)
    logits = jax.lax.dot_general(
        t_ref[...], e_ref[...],
        dimension_numbers=(((1,), (1,)), ((), ())),   # "NT": no E transpose
        preferred_element_type=jnp.float32)           # (Bt, NEt) f32 accum
    logits = logits + b_ref[...]                      # (1, NEt) broadcast
    # sigmoid(x) == 0.5 * tanh(0.5 * x) + 0.5  : one EUP op per element.
    o_ref[...] = (0.5 * jnp.tanh(0.5 * logits) + 0.5).astype(o_ref.dtype)


@functools.partial(
    jax.jit,
    static_argnames=("batch_tile", "entity_tile", "t_batch_tile", "out_dtype"))
def rotate3d_forward(h_idx, r_idx, E, E_score, R, b, *,
                     batch_tile=256, entity_tile=4096, t_batch_tile=16,
                     out_dtype=jnp.bfloat16):
    NE, D = E.shape
    B = h_idx.shape[0]
    scoring_dtype = E_score.dtype

    # Glue: embedding gathers (f32) and 2-D bias.
    h = jnp.take(E, h_idx, axis=0)                        # (B, D)
    r = jnp.take(R, r_idx, axis=0).reshape(B, D, D)       # (B, D, D)
    b2d = b.reshape(1, NE).astype(jnp.float32)            # (1, NE)

    # ---------------- kernel 1: t = bmm(h, r) ----------------
    Btt = min(t_batch_tile, B)
    assert B % Btt == 0

    t_cost = pl.CostEstimate(
        flops=2 * B * D * D,
        transcendentals=0,
        bytes_accessed=B * D * D * 4 + B * D * 4
        + B * D * jnp.dtype(scoring_dtype).itemsize)

    t = pl.pallas_call(
        rotate_t_kernel,
        out_shape=jax.ShapeDtypeStruct((B, D), scoring_dtype),
        grid_spec=pltpu.PrefetchScalarGridSpec(
            num_scalar_prefetch=0,
            grid=(B // Btt,),
            in_specs=[
                pl.BlockSpec((Btt, D), lambda i: (i, 0)),
                pl.BlockSpec((Btt, D, D), lambda i: (i, 0, 0)),
            ],
            out_specs=pl.BlockSpec((Btt, D), lambda i: (i, 0)),
        ),
        compiler_params=pltpu.CompilerParams(
            dimension_semantics=("parallel",),
            vmem_limit_bytes=48 * 1024 * 1024,
        ),
        cost_estimate=t_cost,
    )(h, r)

    # ---------------- kernel 2: x = sigmoid(t @ E^T + b) ----------------
    Bt = min(batch_tile, B)
    NEt = min(entity_tile, NE)
    assert B % Bt == 0 and NE % NEt == 0
    assert (Bt % 8 == 0) or (Bt == B)
    assert (NEt % 128 == 0) or (NEt == NE)   # lane-dense output / E tiles

    nb, nj = B // Bt, NE // NEt
    esize = jnp.dtype(scoring_dtype).itemsize
    osize = jnp.dtype(out_dtype).itemsize
    score_cost = pl.CostEstimate(
        flops=2 * B * D * NE,
        transcendentals=B * NE,
        bytes_accessed=(NE * D * esize          # E read exactly once
                        + nj * B * D * esize    # t re-streamed per NE tile
                        + NE * 4                # bias
                        + B * NE * osize))      # output write

    # Grid: entity tiles OUTER, batch tiles INNER.  E's block index depends
    # only on j, so the large entity-table stream is fetched once per forward;
    # only the tiny (B, D) t tensor is re-fetched per entity tile.
    grid_spec = pltpu.PrefetchScalarGridSpec(
        num_scalar_prefetch=0,
        grid=(nj, nb),
        in_specs=[
            pl.BlockSpec((Bt, D), lambda j, i: (i, 0)),     # t
            pl.BlockSpec((NEt, D), lambda j, i: (j, 0)),    # E (resident per j)
            pl.BlockSpec((1, NEt), lambda j, i: (0, j)),    # bias
        ],
        out_specs=pl.BlockSpec((Bt, NEt), lambda j, i: (i, j)),
    )

    return pl.pallas_call(
        score_kernel,
        out_shape=jax.ShapeDtypeStruct((B, NE), out_dtype),
        grid_spec=grid_spec,
        compiler_params=pltpu.CompilerParams(
            # No cross-step scratch -> both axes fully independent; a 2-TC chip
            # can split the entity axis even when nb == 1 (small-batch case).
            dimension_semantics=("parallel", "parallel"),
            vmem_limit_bytes=48 * 1024 * 1024,   # headroom under v7x's 64 MiB
        ),
        cost_estimate=score_cost,
    )(t, E_score, b2d)


if __name__ == "__main__":
    # Small deterministic config consistent with the module (lane-aligned D).
    num_entities = 1024
    num_relations = 8
    entity_dim = 128
    batch = 16

    key = jax.random.PRNGKey(0)
    k_e, k_r, k_b, k_h, k_rel = jax.random.split(key, 5)

    # Deterministic "kaiming-uniform-like" init (bound = sqrt(6 / fan_in)).
    e_bound = (6.0 / entity_dim) ** 0.5
    r_bound = (6.0 / (entity_dim * entity_dim)) ** 0.5
    E = jax.random.uniform(k_e, (num_entities, entity_dim),
                           minval=-e_bound, maxval=e_bound, dtype=jnp.float32)
    R = jax.random.uniform(k_r, (num_relations, entity_dim * entity_dim),
                           minval=-r_bound, maxval=r_bound, dtype=jnp.float32)
    # Nonzero bias so the bias-add path is actually exercised.
    b = jax.random.uniform(k_b, (num_entities,), minval=-0.5, maxval=0.5,
                           dtype=jnp.float32)

    h_idx = jax.random.randint(k_h, (batch,), 0, num_entities)
    r_idx = jax.random.randint(k_rel, (batch,), 0, num_relations)

    # Persistent bf16 scoring copy of the entity table, created ONCE outside
    # the per-call path (as a real deployment would store it in HBM).
    E_score = E.astype(jnp.bfloat16)

    out = rotate3d_forward(h_idx, r_idx, E, E_score, R, b,
                           batch_tile=256, entity_tile=4096, t_batch_tile=16,
                           out_dtype=jnp.bfloat16)
    out = jax.block_until_ready(out)

    # Pure-JAX f32 reference (bf16 scoring/output -> loosened tolerance).
    h_ref = jnp.take(E, h_idx, axis=0)
    r_ref = jnp.take(R, r_idx, axis=0).reshape(batch, entity_dim, entity_dim)
    t_ref = jnp.einsum("bd,bde->be", h_ref, r_ref)
    x_ref = jax.nn.sigmoid(t_ref @ E.T + b[None, :])

    assert out.shape == (batch, num_entities)
    out_f32 = out.astype(jnp.float32)
    assert jnp.allclose(out_f32, x_ref, atol=2e-2, rtol=2e-2), (
        float(jnp.max(jnp.abs(out_f32 - x_ref))))
    print("KERNEL_OK")
</pallas_src>

<mosaic_0001>
module attributes {stable_mosaic.version = 11 : i64} {
  func.func @rotate_t_kernel(%arg0: i32, %arg1: memref<16x128xf32, #tpu.memory_space<vmem>>, %arg2: memref<16x128x128xf32, #tpu.memory_space<vmem>>, %arg3: memref<16x128xbf16, #tpu.memory_space<vmem>>) attributes {dimension_semantics = [#tpu.dimension_semantics<parallel>], iteration_bounds = array<i64: 1>, scalar_prefetch = 0 : i64, scratch_operands = 0 : i64, tpu.core_type = #tpu.core_type<tc>, window_params = [{transform_indices = @transform_0, window_bounds = array<i64: 16, 128>}, {transform_indices = @transform_1, window_bounds = array<i64: 16, 128, 128>}, {transform_indices = @transform_2, window_bounds = array<i64: 16, 128>}]} {
    %c0 = arith.constant 0 : index
    %c0_0 = arith.constant 0 : index
    %0 = vector.load %arg1[%c0, %c0_0] : memref<16x128xf32, #tpu.memory_space<vmem>>, vector<16x128xf32>
    %c0_1 = arith.constant 0 : index
    %c0_2 = arith.constant 0 : index
    %c0_3 = arith.constant 0 : index
    %1 = vector.load %arg2[%c0_1, %c0_2, %c0_3] : memref<16x128x128xf32, #tpu.memory_space<vmem>>, vector<16x128x128xf32>
    %2 = vector.shape_cast %0 : vector<16x128xf32> to vector<16x128x1xf32>
    %3 = vector.broadcast %2 : vector<16x128x1xf32> to vector<16x128x128xf32>
    %4 = arith.mulf %3, %1 : vector<16x128x128xf32>
    %cst = arith.constant dense<0.000000e+00> : vector<16x128xf32>
    %5 = vector.multi_reduction <add>, %4, %cst [1] : vector<16x128x128xf32> to vector<16x128xf32>
    %6 = arith.truncf %5 : vector<16x128xf32> to vector<16x128xbf16>
    %c0_4 = arith.constant 0 : index
    %c0_5 = arith.constant 0 : index
    %7 = vector.load %arg3[%c0_4, %c0_5] : memref<16x128xbf16, #tpu.memory_space<vmem>>, vector<16x128xbf16>
    tpu.vector_store %arg3[%c0_4, %c0_5], %6 {strides = array<i32>} : memref<16x128xbf16, #tpu.memory_space<vmem>>, vector<16x128xbf16>,
    return
  }
  func.func @transform_0(%arg0: i32) -> (i32, i32) {
    %c0_i32 = arith.constant 0 : i32
    %c0_i32_0 = arith.constant 0 : i32
    return %arg0, %c0_i32 : i32, i32
  }
  func.func @transform_1(%arg0: i32) -> (i32, i32, i32) {
    %c0_i32 = arith.constant 0 : i32
    %c0_i32_0 = arith.constant 0 : i32
    %c0_i32_1 = arith.constant 0 : i32
    return %arg0, %c0_i32, %c0_i32_0 : i32, i32, i32
  }
  func.func @transform_2(%arg0: i32) -> (i32, i32) {
    %c0_i32 = arith.constant 0 : i32
    %c0_i32_0 = arith.constant 0 : i32
    return %arg0, %c0_i32 : i32, i32
  }
}

module attributes {stable_mosaic.version = 11 : i64} {
  func.func @score_kernel(%arg0: i32, %arg1: i32, %arg2: memref<16x128xbf16, #tpu.memory_space<vmem>>, %arg3: memref<1024x128xbf16, #tpu.memory_space<vmem>>, %arg4: memref<1x1024xf32, #tpu.memory_space<vmem>>, %arg5: memref<16x1024xbf16, #tpu.memory_space<vmem>>) attributes {dimension_semantics = [#tpu.dimension_semantics<parallel>, #tpu.dimension_semantics<parallel>], iteration_bounds = array<i64: 1, 1>, scalar_prefetch = 0 : i64, scratch_operands = 0 : i64, tpu.core_type = #tpu.core_type<tc>, window_params = [{transform_indices = @transform_0, window_bounds = array<i64: 16, 128>}, {transform_indices = @transform_1, window_bounds = array<i64: 1024, 128>}, {transform_indices = @transform_2, window_bounds = array<i64: 1, 1024>}, {transform_indices = @transform_3, window_bounds = array<i64: 16, 1024>}]} {
    %c0 = arith.constant 0 : index
    %c0_0 = arith.constant 0 : index
    %0 = vector.load %arg2[%c0, %c0_0] : memref<16x128xbf16, #tpu.memory_space<vmem>>, vector<16x128xbf16>
    %c0_1 = arith.constant 0 : index
    %c0_2 = arith.constant 0 : index
    %1 = vector.load %arg3[%c0_1, %c0_2] : memref<1024x128xbf16, #tpu.memory_space<vmem>>, vector<1024x128xbf16>
    %cst = arith.constant dense<0.000000e+00> : vector<16x1024xf32>
    %2 = tpu.matmul %0, %1, %cst {dimension_numbers = #tpu.dot_dimension_numbers<[1], [1], [0], [0], [0, 0, 1, 0], [], []>} : vector<16x128xbf16>, vector<1024x128xbf16>, vector<16x1024xf32> -> vector<16x1024xf32>
    %c0_3 = arith.constant 0 : index
    %c0_4 = arith.constant 0 : index
    %3 = vector.load %arg4[%c0_3, %c0_4] : memref<1x1024xf32, #tpu.memory_space<vmem>>, vector<1x1024xf32>
    %4 = vector.broadcast %3 : vector<1x1024xf32> to vector<16x1024xf32>
    %5 = arith.addf %2, %4 : vector<16x1024xf32>
    %cst_5 = arith.constant 5.000000e-01 : f32
    %6 = vector.broadcast %cst_5 : f32 to vector<16x1024xf32>
    %7 = arith.mulf %6, %5 : vector<16x1024xf32>
    %8 = math.tanh %7 : vector<16x1024xf32>
    %cst_6 = arith.constant 5.000000e-01 : f32
    %9 = vector.broadcast %cst_6 : f32 to vector<16x1024xf32>
    %10 = arith.mulf %9, %8 : vector<16x1024xf32>
    %cst_7 = arith.constant 5.000000e-01 : f32
    %11 = vector.broadcast %cst_7 : f32 to vector<16x1024xf32>
    %12 = arith.addf %10, %11 : vector<16x1024xf32>
    %13 = arith.truncf %12 : vector<16x1024xf32> to vector<16x1024xbf16>
    %c0_8 = arith.constant 0 : index
    %c0_9 = arith.constant 0 : index
    %14 = vector.load %arg5[%c0_8, %c0_9] : memref<16x1024xbf16, #tpu.memory_space<vmem>>, vector<16x1024xbf16>
    tpu.vector_store %arg5[%c0_8, %c0_9], %13 {strides = array<i32>} : memref<16x1024xbf16, #tpu.memory_space<vmem>>, vector<16x1024xbf16>,
    return
  }
  func.func @transform_0(%arg0: i32, %arg1: i32) -> (i32, i32) {
    %c0_i32 = arith.constant 0 : i32
    %c0_i32_0 = arith.constant 0 : i32
    return %arg1, %c0_i32 : i32, i32
  }
  func.func @transform_1(%arg0: i32, %arg1: i32) -> (i32, i32) {
    %c0_i32 = arith.constant 0 : i32
    %c0_i32_0 = arith.constant 0 : i32
    return %arg0, %c0_i32 : i32, i32
  }
  func.func @transform_2(%arg0: i32, %arg1: i32) -> (i32, i32) {
    %c0_i32 = arith.constant 0 : i32
    %c0_i32_0 = arith.constant 0 : i32
    return %c0_i32, %arg0 : i32, i32
  }
  func.func @transform_3(%arg0: i32, %arg1: i32) -> (i32, i32) {
    %c0_i32 = arith.constant 0 : i32
    return %arg1, %arg0 : i32, i32
  }
}

</mosaic_0001>

<llo_original>
// kernel: rotate3d_forward.2
$region0: #{rotate3d_forward.2}
  #allocation0 [shape = 'u32[]', space=smem, size = 0x4, offset = 0x4, fixed_abs, tag = 'smem constant byte address 0x4 - core index']
  #allocation1 [shape = 'u32[144,128]{1,0:T(1,128)}', space=vmem, size = 0x12000, scoped, tag = 'internal scratch']
  %s0 = inlined_call_operand.vmem [shape: f32[16,128], index: 0, kind: input, shape index: {}]
  %s1 = inlined_call_operand.vmem [shape: f32[16,128,128], index: 1, kind: input, shape index: {}]
  %s2 = inlined_call_operand.vmem [shape: bf16[16,128], index: 2, kind: output, shape index: {}]
  %s3 = sld [smem:[#allocation0]]
  $region18: #{rotate3d_forward.2} parent=0
    _
  %s5 = ssub.s32 1, %s3
  %s6 = scalar_select 0, %s5, %s3
  // Predicated region
  $region2: #{rotate3d_forward.2} parent=0 // pred_check
    _
  $region3: #{rotate3d_forward.2} parent=0 // pred_check_branch
    %8 = sbr.rel (0) target = $region5
  $region4: #{rotate3d_forward.2} parent=0 // pred_region
    _
  $region5: #{rotate3d_forward.2} parent=0 // pred_fallthru
    _
  // Predicated region
  $region6: #{rotate3d_forward.2} parent=0 // pred_check
    _
  $region7: #{rotate3d_forward.2} parent=0 // pred_check_branch
    %10 = sbr.rel (0) target = $region9
  $region8: #{rotate3d_forward.2} parent=0 // pred_region
    _
  $region9: #{rotate3d_forward.2} parent=0 // pred_fallthru
    _
  %v11 = vld [vmem:[%s0] sm:$0xff]
  %v12 = vld [vmem:[%s0 + $0x8] sm:$0xff]
  %v13 = vld [vmem:[%s1] sm:$0xff]
  %v14 = vld [vmem:[%s1 + $0x8] sm:$0xff]
  %v15 = vld [vmem:[%s1 + $0x10] sm:$0xff]
  %v16 = vld [vmem:[%s1 + $0x18] sm:$0xff]
  %v17 = vld [vmem:[%s1 + $0x20] sm:$0xff]
  %v18 = vld [vmem:[%s1 + $0x28] sm:$0xff]
  %v19 = vld [vmem:[%s1 + $0x30] sm:$0xff]
  %v20 = vld [vmem:[%s1 + $0x38] sm:$0xff]
  %v21 = vld [vmem:[%s1 + $0x40] sm:$0xff]
  %v22 = vld [vmem:[%s1 + $0x48] sm:$0xff]
  %v23 = vld [vmem:[%s1 + $0x50] sm:$0xff]
  %v24 = vld [vmem:[%s1 + $0x58] sm:$0xff]
  %v25 = vld [vmem:[%s1 + $0x60] sm:$0xff]
  %v26 = vld [vmem:[%s1 + $0x68] sm:$0xff]
  %v27 = vld [vmem:[%s1 + $0x70] sm:$0xff]
  %v28 = vld [vmem:[%s1 + $0x78] sm:$0xff]
  %v29 = vld [vmem:[%s1 + $0x80] sm:$0xff]
  %v30 = vld [vmem:[%s1 + $0x88] sm:$0xff]
  %v31 = vld [vmem:[%s1 + $0x90] sm:$0xff]
  %v32 = vld [vmem:[%s1 + $0x98] sm:$0xff]
  %v33 = vld [vmem:[%s1 + $0xa0] sm:$0xff]
  %v34 = vld [vmem:[%s1 + $0xa8] sm:$0xff]
  %v35 = vld [vmem:[%s1 + $0xb0] sm:$0xff]
  %v36 = vld [vmem:[%s1 + $0xb8] sm:$0xff]
  %v37 = vld [vmem:[%s1 + $0xc0] sm:$0xff]
  %v38 = vld [vmem:[%s1 + $0xc8] sm:$0xff]
  %v39 = vld [vmem:[%s1 + $0xd0] sm:$0xff]
  %v40 = vld [vmem:[%s1 + $0xd8] sm:$0xff]
  %v41 = vld [vmem:[%s1 + $0xe0] sm:$0xff]
  %v42 = vld [vmem:[%s1 + $0xe8] sm:$0xff]
  %v43 = vld [vmem:[%s1 + $0xf0] sm:$0xff]
  %v44 = vld [vmem:[%s1 + $0xf8] sm:$0xff]
  %v45 = vld [vmem:[%s1 + $0x100] sm:$0xff]
  %v46 = vld [vmem:[%s1 + $0x108] sm:$0xff]
  %v47 = vld [vmem:[%s1 + $0x110] sm:$0xff]
  %v48 = vld [vmem:[%s1 + $0x118] sm:$0xff]
  %v49 = vld [vmem:[%s1 + $0x120] sm:$0xff]
  %v50 = vld [vmem:[%s1 + $0x128] sm:$0xff]
  %v51 = vld [vmem:[%s1 + $0x130] sm:$0xff]
  %v52 = vld [vmem:[%s1 + $0x138] sm:$0xff]
  %v53 = vld [vmem:[%s1 + $0x140] sm:$0xff]
  %v54 = vld [vmem:[%s1 + $0x148] sm:$0xff]
  %v55 = vld [vmem:[%s1 + $0x150] sm:$0xff]
  %v56 = vld [vmem:[%s1 + $0x158] sm:$0xff]
  %v57 = vld [vmem:[%s1 + $0x160] sm:$0xff]
  %v58 = vld [vmem:[%s1 + $0x168] sm:$0xff]
  %v59 = vld [vmem:[%s1 + $0x170] sm:$0xff]
  %v60 = vld [vmem:[%s1 + $0x178] sm:$0xff]
  %v61 = vld [vmem:[%s1 + $0x180] sm:$0xff]
  %v62 = vld [vmem:[%s1 + $0x188] sm:$0xff]
  %v63 = vld [vmem:[%s1 + $0x190] sm:$0xff]
  %v64 = vld [vmem:[%s1 + $0x198] sm:$0xff]
  %v65 = vld [vmem:[%s1 + $0x1a0] sm:$0xff]
  %v66 = vld [vmem:[%s1 + $0x1a8] sm:$0xff]
  %v67 = vld [vmem:[%s1 + $0x1b0] sm:$0xff]
  %v68 = vld [vmem:[%s1 + $0x1b8] sm:$0xff]
  %v69 = vld [vmem:[%s1 + $0x1c0] sm:$0xff]
  %v70 = vld [vmem:[%s1 + $0x1c8] sm:$0xff]
  %v71 = vld [vmem:[%s1 + $0x1d0] sm:$0xff]
  %v72 = vld [vmem:[%s1 + $0x1d8] sm:$0xff]
  %v73 = vld [vmem:[%s1 + $0x1e0] sm:$0xff]
  %v74 = vld [vmem:[%s1 + $0x1e8] sm:$0xff]
  %v75 = vld [vmem:[%s1 + $0x1f0] sm:$0xff]
  %v76 = vld [vmem:[%s1 + $0x1f8] sm:$0xff]
  %v77 = vld [vmem:[%s1 + $0x200] sm:$0xff]
  %v78 = vld [vmem:[%s1 + $0x208] sm:$0xff]
  %v79 = vld [vmem:[%s1 + $0x210] sm:$0xff]
  %v80 = vld [vmem:[%s1 + $0x218] sm:$0xff]
  %v81 = vld [vmem:[%s1 + $0x220] sm:$0xff]
  %v82 = vld [vmem:[%s1 + $0x228] sm:$0xff]
  %v83 = vld [vmem:[%s1 + $0x230] sm:$0xff]
  %v84 = vld [vmem:[%s1 + $0x238] sm:$0xff]
  %v85 = vld [vmem:[%s1 + $0x240] sm:$0xff]
  %v86 = vld [vmem:[%s1 + $0x248] sm:$0xff]
  %v87 = vld [vmem:[%s1 + $0x250] sm:$0xff]
  %v88 = vld [vmem:[%s1 + $0x258] sm:$0xff]
  %v89 = vld [vmem:[%s1 + $0x260] sm:$0xff]
  %v90 = vld [vmem:[%s1 + $0x268] sm:$0xff]
  %v91 = vld [vmem:[%s1 + $0x270] sm:$0xff]
  %v92 = vld [vmem:[%s1 + $0x278] sm:$0xff]
  %v93 = vld [vmem:[%s1 + $0x280] sm:$0xff]
  %v94 = vld [vmem:[%s1 + $0x288] sm:$0xff]
  %v95 = vld [vmem:[%s1 + $0x290] sm:$0xff]
  %v96 = vld [vmem:[%s1 + $0x298] sm:$0xff]
  %v97 = vld [vmem:[%s1 + $0x2a0] sm:$0xff]
  %v98 = vld [vmem:[%s1 + $0x2a8] sm:$0xff]
  %v99 = vld [vmem:[%s1 + $0x2b0] sm:$0xff]
  %v100 = vld [vmem:[%s1 + $0x2b8] sm:$0xff]
  %v101 = vld [vmem:[%s1 + $0x2c0] sm:$0xff]
  %v102 = vld [vmem:[%s1 + $0x2c8] sm:$0xff]
  %v103 = vld [vmem:[%s1 + $0x2d0] sm:$0xff]
  %v104 = vld [vmem:[%s1 + $0x2d8] sm:$0xff]
  %v105 = vld [vmem:[%s1 + $0x2e0] sm:$0xff]
  %v106 = vld [vmem:[%s1 + $0x2e8] sm:$0xff]
  %v107 = vld [vmem:[%s1 + $0x2f0] sm:$0xff]
  %v108 = vld [vmem:[%s1 + $0x2f8] sm:$0xff]
  %v109 = vld [vmem:[%s1 + $0x300] sm:$0xff]
  %v110 = vld [vmem:[%s1 + $0x308] sm:$0xff]
  %v111 = vld [vmem:[%s1 + $0x310] sm:$0xff]
  %v112 = vld [vmem:[%s1 + $0x318] sm:$0xff]
  %v113 = vld [vmem:[%s1 + $0x320] sm:$0xff]
  %v114 = vld [vmem:[%s1 + $0x328] sm:$0xff]
  %v115 = vld [vmem:[%s1 + $0x330] sm:$0xff]
  %v116 = vld [vmem:[%s1 + $0x338] sm:$0xff]
  %v117 = vld [vmem:[%s1 + $0x340] sm:$0xff]
  %v118 = vld [vmem:[%s1 + $0x348] sm:$0xff]
  %v119 = vld [vmem:[%s1 + $0x350] sm:$0xff]
  %v120 = vld [vmem:[%s1 + $0x358] sm:$0xff]
  %v121 = vld [vmem:[%s1 + $0x360] sm:$0xff]
  %v122 = vld [vmem:[%s1 + $0x368] sm:$0xff]
  %v123 = vld [vmem:[%s1 + $0x370] sm:$0xff]
  %v124 = vld [vmem:[%s1 + $0x378] sm:$0xff]
  %v125 = vld [vmem:[%s1 + $0x380] sm:$0xff]
  %v126 = vld [vmem:[%s1 + $0x388] sm:$0xff]
  %v127 = vld [vmem:[%s1 + $0x390] sm:$0xff]
  %v128 = vld [vmem:[%s1 + $0x398] sm:$0xff]
  %v129 = vld [vmem:[%s1 + $0x3a0] sm:$0xff]
  %v130 = vld [vmem:[%s1 + $0x3a8] sm:$0xff]
  %v131 = vld [vmem:[%s1 + $0x3b0] sm:$0xff]
  %v132 = vld [vmem:[%s1 + $0x3b8] sm:$0xff]
  %v133 = vld [vmem:[%s1 + $0x3c0] sm:$0xff]
  %v134 = vld [vmem:[%s1 + $0x3c8] sm:$0xff]
  %v135 = vld [vmem:[%s1 + $0x3d0] sm:$0xff]
  %v136 = vld [vmem:[%s1 + $0x3d8] sm:$0xff]
  %v137 = vld [vmem:[%s1 + $0x3e0] sm:$0xff]
  %v138 = vld [vmem:[%s1 + $0x3e8] sm:$0xff]
  %v139 = vld [vmem:[%s1 + $0x3f0] sm:$0xff]
  %v140 = vld [vmem:[%s1 + $0x3f8] sm:$0xff]
  %v141 = vld [vmem:[%s1 + $0x400] sm:$0xff]
  %v142 = vld [vmem:[%s1 + $0x408] sm:$0xff]
  %v143 = vld [vmem:[%s1 + $0x410] sm:$0xff]
  %v144 = vld [vmem:[%s1 + $0x418] sm:$0xff]
  %v145 = vld [vmem:[%s1 + $0x420] sm:$0xff]
  %v146 = vld [vmem:[%s1 + $0x428] sm:$0xff]
  %v147 = vld [vmem:[%s1 + $0x430] sm:$0xff]
  %v148 = vld [vmem:[%s1 + $0x438] sm:$0xff]
  %v149 = vld [vmem:[%s1 + $0x440] sm:$0xff]
  %v150 = vld [vmem:[%s1 + $0x448] sm:$0xff]
  %v151 = vld [vmem:[%s1 + $0x450] sm:$0xff]
  %v152 = vld [vmem:[%s1 + $0x458] sm:$0xff]
  %v153 = vld [vmem:[%s1 + $0x460] sm:$0xff]
  %v154 = vld [vmem:[%s1 + $0x468] sm:$0xff]
  %v155 = vld [vmem:[%s1 + $0x470] sm:$0xff]
  %v156 = vld [vmem:[%s1 + $0x478] sm:$0xff]
  %v157 = vld [vmem:[%s1 + $0x480] sm:$0xff]
  %v158 = vld [vmem:[%s1 + $0x488] sm:$0xff]
  %v159 = vld [vmem:[%s1 + $0x490] sm:$0xff]
  %v160 = vld [vmem:[%s1 + $0x498] sm:$0xff]
  %v161 = vld [vmem:[%s1 + $0x4a0] sm:$0xff]
  %v162 = vld [vmem:[%s1 + $0x4a8] sm:$0xff]
  %v163 = vld [vmem:[%s1 + $0x4b0] sm:$0xff]
  %v164 = vld [vmem:[%s1 + $0x4b8] sm:$0xff]
  %v165 = vld [vmem:[%s1 + $0x4c0] sm:$0xff]
  %v166 = vld [vmem:[%s1 + $0x4c8] sm:$0xff]
  %v167 = vld [vmem:[%s1 + $0x4d0] sm:$0xff]
  %v168 = vld [vmem:[%s1 + $0x4d8] sm:$0xff]
  %v169 = vld [vmem:[%s1 + $0x4e0] sm:$0xff]
  %v170 = vld [vmem:[%s1 + $0x4e8] sm:$0xff]
  %v171 = vld [vmem:[%s1 + $0x4f0] sm:$0xff]
  %v172 = vld [vmem:[%s1 + $0x4f8] sm:$0xff]
  %v173 = vld [vmem:[%s1 + $0x500] sm:$0xff]
  %v174 = vld [vmem:[%s1 + $0x508] sm:$0xff]
  %v175 = vld [vmem:[%s1 + $0x510] sm:$0xff]
  %v176 = vld [vmem:[%s1 + $0x518] sm:$0xff]
  %v177 = vld [vmem:[%s1 + $0x520] sm:$0xff]
  %v178 = vld [vmem:[%s1 + $0x528] sm:$0xff]
  %v179 = vld [vmem:[%s1 + $0x530] sm:$0xff]
  %v180 = vld [vmem:[%s1 + $0x538] sm:$0xff]
  %v181 = vld [vmem:[%s1 + $0x540] sm:$0xff]
  %v182 = vld [vmem:[%s1 + $0x548] sm:$0xff]
  %v183 = vld [vmem:[%s1 + $0x550] sm:$0xff]
  %v184 = vld [vmem:[%s1 + $0x558] sm:$0xff]
  %v185 = vld [vmem:[%s1 + $0x560] sm:$0xff]
  %v186 = vld [vmem:[%s1 + $0x568] sm:$0xff]
  %v187 = vld [vmem:[%s1 + $0x570] sm:$0xff]
  %v188 = vld [vmem:[%s1 + $0x578] sm:$0xff]
  %v189 = vld [vmem:[%s1 + $0x580] sm:$0xff]
  %v190 = vld [vmem:[%s1 + $0x588] sm:$0xff]
  %v191 = vld [vmem:[%s1 + $0x590] sm:$0xff]
  %v192 = vld [vmem:[%s1 + $0x598] sm:$0xff]
  %v193 = vld [vmem:[%s1 + $0x5a0] sm:$0xff]
  %v194 = vld [vmem:[%s1 + $0x5a8] sm:$0xff]
  %v195 = vld [vmem:[%s1 + $0x5b0] sm:$0xff]
  %v196 = vld [vmem:[%s1 + $0x5b8] sm:$0xff]
  %v197 = vld [vmem:[%s1 + $0x5c0] sm:$0xff]
  %v198 = vld [vmem:[%s1 + $0x5c8] sm:$0xff]
  %v199 = vld [vmem:[%s1 + $0x5d0] sm:$0xff]
  %v200 = vld [vmem:[%s1 + $0x5d8] sm:$0xff]
  %v201 = vld [vmem:[%s1 + $0x5e0] sm:$0xff]
  %v202 = vld [vmem:[%s1 + $0x5e8] sm:$0xff]
  %v203 = vld [vmem:[%s1 + $0x5f0] sm:$0xff]
  %v204 = vld [vmem:[%s1 + $0x5f8] sm:$0xff]
  %v205 = vld [vmem:[%s1 + $0x600] sm:$0xff]
  %v206 = vld [vmem:[%s1 + $0x608] sm:$0xff]
  %v207 = vld [vmem:[%s1 + $0x610] sm:$0xff]
  %v208 = vld [vmem:[%s1 + $0x618] sm:$0xff]
  %v209 = vld [vmem:[%s1 + $0x620] sm:$0xff]
  %v210 = vld [vmem:[%s1 + $0x628] sm:$0xff]
  %v211 = vld [vmem:[%s1 + $0x630] sm:$0xff]
  %v212 = vld [vmem:[%s1 + $0x638] sm:$0xff]
  %v213 = vld [vmem:[%s1 + $0x640] sm:$0xff]
  %v214 = vld [vmem:[%s1 + $0x648] sm:$0xff]
  %v215 = vld [vmem:[%s1 + $0x650] sm:$0xff]
  %v216 = vld [vmem:[%s1 + $0x658] sm:$0xff]
  %v217 = vld [vmem:[%s1 + $0x660] sm:$0xff]
  %v218 = vld [vmem:[%s1 + $0x668] sm:$0xff]
  %v219 = vld [vmem:[%s1 + $0x670] sm:$0xff]
  %v220 = vld [vmem:[%s1 + $0x678] sm:$0xff]
  %v221 = vld [vmem:[%s1 + $0x680] sm:$0xff]
  %v222 = vld [vmem:[%s1 + $0x688] sm:$0xff]
  %v223 = vld [vmem:[%s1 + $0x690] sm:$0xff]
  %v224 = vld [vmem:[%s1 + $0x698] sm:$0xff]
  %v225 = vld [vmem:[%s1 + $0x6a0] sm:$0xff]
  %v226 = vld [vmem:[%s1 + $0x6a8] sm:$0xff]
  %v227 = vld [vmem:[%s1 + $0x6b0] sm:$0xff]
  %v228 = vld [vmem:[%s1 + $0x6b8] sm:$0xff]
  %v229 = vld [vmem:[%s1 + $0x6c0] sm:$0xff]
  %v230 = vld [vmem:[%s1 + $0x6c8] sm:$0xff]
  %v231 = vld [vmem:[%s1 + $0x6d0] sm:$0xff]
  %v232 = vld [vmem:[%s1 + $0x6d8] sm:$0xff]
  %v233 = vld [vmem:[%s1 + $0x6e0] sm:$0xff]
  %v234 = vld [vmem:[%s1 + $0x6e8] sm:$0xff]
  %v235 = vld [vmem:[%s1 + $0x6f0] sm:$0xff]
  %v236 = vld [vmem:[%s1 + $0x6f8] sm:$0xff]
  %v237 = vld [vmem:[%s1 + $0x700] sm:$0xff]
  %v238 = vld [vmem:[%s1 + $0x708] sm:$0xff]
  %v239 = vld [vmem:[%s1 + $0x710] sm:$0xff]
  %v240 = vld [vmem:[%s1 + $0x718] sm:$0xff]
  %v241 = vld [vmem:[%s1 + $0x720] sm:$0xff]
  %v242 = vld [vmem:[%s1 + $0x728] sm:$0xff]
  %v243 = vld [vmem:[%s1 + $0x730] sm:$0xff]
  %v244 = vld [vmem:[%s1 + $0x738] sm:$0xff]
  %v245 = vld [vmem:[%s1 + $0x740] sm:$0xff]
  %v246 = vld [vmem:[%s1 + $0x748] sm:$0xff]
  %v247 = vld [vmem:[%s1 + $0x750] sm:$0xff]
  %v248 = vld [vmem:[%s1 + $0x758] sm:$0xff]
  %v249 = vld [vmem:[%s1 + $0x760] sm:$0xff]
  %v250 = vld [vmem:[%s1 + $0x768] sm:$0xff]
  %v251 = vld [vmem:[%s1 + $0x770] sm:$0xff]
  %v252 = vld [vmem:[%s1 + $0x778] sm:$0xff]
  %v253 = vld [vmem:[%s1 + $0x780] sm:$0xff]
  %v254 = vld [vmem:[%s1 + $0x788] sm:$0xff]
  %v255 = vld [vmem:[%s1 + $0x790] sm:$0xff]
  %v256 = vld [vmem:[%s1 + $0x798] sm:$0xff]
  %v257 = vld [vmem:[%s1 + $0x7a0] sm:$0xff]
  %v258 = vld [vmem:[%s1 + $0x7a8] sm:$0xff]
  %v259 = vld [vmem:[%s1 + $0x7b0] sm:$0xff]
  %v260 = vld [vmem:[%s1 + $0x7b8] sm:$0xff]
  %v261 = vld [vmem:[%s1 + $0x7c0] sm:$0xff]
  %v262 = vld [vmem:[%s1 + $0x7c8] sm:$0xff]
  %v263 = vld [vmem:[%s1 + $0x7d0] sm:$0xff]
  %v264 = vld [vmem:[%s1 + $0x7d8] sm:$0xff]
  %v265 = vld [vmem:[%s1 + $0x7e0] sm:$0xff]
  %v266 = vld [vmem:[%s1 + $0x7e8] sm:$0xff]
  %v267 = vld [vmem:[%s1 + $0x7f0] sm:$0xff]
  %v268 = vld [vmem:[%s1 + $0x7f8] sm:$0xff]
  %v269 = vlaneseq
  %v270 = vshrl.u32 %v269, 7
  %v271 = vsub.s32 0, %v270
  %v272 = vrot.slane %v11, %v271
  %274 = vbcast.lane.b32.xlu0 %v272, 256
  %v275 = vpop.permute.xlu0 %274
  %s277 = sor.u32 256, 8
  %278 = vbcast.lane.b32.xlu0 %v272, %s277
  %v279 = vpop.permute.xlu0 %278
  %s281 = sor.u32 256, 16
  %282 = vbcast.lane.b32.xlu0 %v272, %s281
  %v283 = vpop.permute.xlu0 %282
  %s285 = sor.u32 256, 24
  %286 = vbcast.lane.b32.xlu0 %v272, %s285
  %v287 = vpop.permute.xlu0 %286
  %s289 = sor.u32 256, 32
  %290 = vbcast.lane.b32.xlu0 %v272, %s289
  %v291 = vpop.permute.xlu0 %290
  %s293 = sor.u32 256, 40
  %294 = vbcast.lane.b32.xlu0 %v272, %s293
  %v295 = vpop.permute.xlu0 %294
  %s297 = sor.u32 256, 48
  %298 = vbcast.lane.b32.xlu0 %v272, %s297
  %v299 = vpop.permute.xlu0 %298
  %s301 = sor.u32 256, 56
  %302 = vbcast.lane.b32.xlu0 %v272, %s301
  %v303 = vpop.permute.xlu0 %302
  %s305 = sor.u32 256, 64
  %306 = vbcast.lane.b32.xlu0 %v272, %s305
  %v307 = vpop.permute.xlu0 %306
  %s309 = sor.u32 256, 72
  %310 = vbcast.lane.b32.xlu0 %v272, %s309
  %v311 = vpop.permute.xlu0 %310
  %s313 = sor.u32 256, 80
  %314 = vbcast.lane.b32.xlu0 %v272, %s313
  %v315 = vpop.permute.xlu0 %314
  %s317 = sor.u32 256, 88
  %318 = vbcast.lane.b32.xlu0 %v272, %s317
  %v319 = vpop.permute.xlu0 %318
  %s321 = sor.u32 256, 96
  %322 = vbcast.lane.b32.xlu0 %v272, %s321
  %v323 = vpop.permute.xlu0 %322
  %s325 = sor.u32 256, 104
  %326 = vbcast.lane.b32.xlu0 %v272, %s325
  %v327 = vpop.permute.xlu0 %326
  %s329 = sor.u32 256, 112
  %330 = vbcast.lane.b32.xlu0 %v272, %s329
  %v331 = vpop.permute.xlu0 %330
  %s333 = sor.u32 256, 120
  %334 = vbcast.lane.b32.xlu0 %v272, %s333
  %v335 = vpop.permute.xlu0 %334
  %v336 = vlaneseq
  %v337 = vshrl.u32 %v336, 7
  %v338 = vsub.s32 1, %v337
  %v339 = vrot.slane %v11, %v338
  %341 = vbcast.lane.b32.xlu0 %v339, 256
  %v342 = vpop.permute.xlu0 %341
  %s344 = sor.u32 256, 8
  %345 = vbcast.lane.b32.xlu0 %v339, %s344
  %v346 = vpop.permute.xlu0 %345
  %s348 = sor.u32 256, 16
  %349 = vbcast.lane.b32.xlu0 %v339, %s348
  %v350 = vpop.permute.xlu0 %349
  %s352 = sor.u32 256, 24
  %353 = vbcast.lane.b32.xlu0 %v339, %s352
  %v354 = vpop.permute.xlu0 %353
  %s356 = sor.u32 256, 32
  %357 = vbcast.lane.b32.xlu0 %v339, %s356
  %v358 = vpop.permute.xlu0 %357
  %s360 = sor.u32 256, 40
  %361 = vbcast.lane.b32.xlu0 %v339, %s360
  %v362 = vpop.permute.xlu0 %361
  %s364 = sor.u32 256, 48
  %365 = vbcast.lane.b32.xlu0 %v339, %s364
  %v366 = vpop.permute.xlu0 %365
  %s368 = sor.u32 256, 56
  %369 = vbcast.lane.b32.xlu0 %v339, %s368
  %v370 = vpop.permute.xlu0 %369
  %s372 = sor.u32 256, 64
  %373 = vbcast.lane.b32.xlu0 %v339, %s372
  %v374 = vpop.permute.xlu0 %373
  %s376 = sor.u32 256, 72
  %377 = vbcast.lane.b32.xlu0 %v339, %s376
  %v378 = vpop.permute.xlu0 %377
  %s380 = sor.u32 256, 80
  %381 = vbcast.lane.b32.xlu0 %v339, %s380
  %v382 = vpop.permute.xlu0 %381
  %s384 = sor.u32 256, 88
  %385 = vbcast.lane.b32.xlu0 %v339, %s384
  %v386 = vpop.permute.xlu0 %385
  %s388 = sor.u32 256, 96
  %389 = vbcast.lane.b32.xlu0 %v339, %s388
  %v390 = vpop.permute.xlu0 %389
  %s392 = sor.u32 256, 104
  %393 = vbcast.lane.b32.xlu0 %v339, %s392
  %v394 = vpop.permute.xlu0 %393
  %s396 = sor.u32 256, 112
  %397 = vbcast.lane.b32.xlu0 %v339, %s396
  %v398 = vpop.permute.xlu0 %397
  %s400 = sor.u32 256, 120
  %401 = vbcast.lane.b32.xlu0 %v339, %s400
  %v402 = vpop.permute.xlu0 %401
  %v403 = vlaneseq
  %v404 = vshrl.u32 %v403, 7
  %v405 = vsub.s32 2, %v404
  %v406 = vrot.slane %v11, %v405
  %408 = vbcast.lane.b32.xlu0 %v406, 256
  %v409 = vpop.permute.xlu0 %408
  %s411 = sor.u32 256, 8
  %412 = vbcast.lane.b32.xlu0 %v406, %s411
  %v413 = vpop.permute.xlu0 %412
  %s415 = sor.u32 256, 16
  %416 = vbcast.lane.b32.xlu0 %v406, %s415
  %v417 = vpop.permute.xlu0 %416
  %s419 = sor.u32 256, 24
  %420 = vbcast.lane.b32.xlu0 %v406, %s419
  %v421 = vpop.permute.xlu0 %420
  %s423 = sor.u32 256, 32
  %424 = vbcast.lane.b32.xlu0 %v406, %s423
  %v425 = vpop.permute.xlu0 %424
  %s427 = sor.u32 256, 40
  %428 = vbcast.lane.b32.xlu0 %v406, %s427
  %v429 = vpop.permute.xlu0 %428
  %s431 = sor.u32 256, 48
  %432 = vbcast.lane.b32.xlu0 %v406, %s431
  %v433 = vpop.permute.xlu0 %432
  %s435 = sor.u32 256, 56
  %436 = vbcast.lane.b32.xlu0 %v406, %s435
  %v437 = vpop.permute.xlu0 %436
  %s439 = sor.u32 256, 64
  %440 = vbcast.lane.b32.xlu0 %v406, %s439
  %v441 = vpop.permute.xlu0 %440
  %s443 = sor.u32 256, 72
  %444 = vbcast.lane.b32.xlu0 %v406, %s443
  %v445 = vpop.permute.xlu0 %444
  %s447 = sor.u32 256, 80
  %448 = vbcast.lane.b32.xlu0 %v406, %s447
  %v449 = vpop.permute.xlu0 %448
  %s451 = sor.u32 256, 88
  %452 = vbcast.lane.b32.xlu0 %v406, %s451
  %v453 = vpop.permute.xlu0 %452
  %s455 = sor.u32 256, 96
  %456 = vbcast.lane.b32.xlu0 %v406, %s455
  %v457 = vpop.permute.xlu0 %456
  %s459 = sor.u32 256, 104
  %460 = vbcast.lane.b32.xlu0 %v406, %s459
  %v461 = vpop.permute.xlu0 %460
  %s463 = sor.u32 256, 112
  %464 = vbcast.lane.b32.xlu0 %v406, %s463
  %v465 = vpop.permute.xlu0 %464
  %s467 = sor.u32 256, 120
  %468 = vbcast.lane.b32.xlu0 %v406, %s467
  %v469 = vpop.permute.xlu0 %468
  %v470 = vlaneseq
  %v471 = vshrl.u32 %v470, 7
  %v472 = vsub.s32 3, %v471
  %v473 = vrot.slane %v11, %v472
  %475 = vbcast.lane.b32.xlu0 %v473, 256
  %v476 = vpop.permute.xlu0 %475
  %s478 = sor.u32 256, 8
  %479 = vbcast.lane.b32.xlu0 %v473, %s478
  %v480 = vpop.permute.xlu0 %479
  %s482 = sor.u32 256, 16
  %483 = vbcast.lane.b32.xlu0 %v473, %s482
  %v484 = vpop.permute.xlu0 %483
  %s486 = sor.u32 256, 24
  %487 = vbcast.lane.b32.xlu0 %v473, %s486
  %v488 = vpop.permute.xlu0 %487
  %s490 = sor.u32 256, 32
  %491 = vbcast.lane.b32.xlu0 %v473, %s490
  %v492 = vpop.permute.xlu0 %491
  %s494 = sor.u32 256, 40
  %495 = vbcast.lane.b32.xlu0 %v473, %s494
  %v496 = vpop.permute.xlu0 %495
  %s498 = sor.u32 256, 48
  %499 = vbcast.lane.b32.xlu0 %v473, %s498
  %v500 = vpop.permute.xlu0 %499
  %s502 = sor.u32 256, 56
  %503 = vbcast.lane.b32.xlu0 %v473, %s502
  %v504 = vpop.permute.xlu0 %503
  %s506 = sor.u32 256, 64
  %507 = vbcast.lane.b32.xlu0 %v473, %s506
  %v508 = vpop.permute.xlu0 %507
  %s510 = sor.u32 256, 72
  %511 = vbcast.lane.b32.xlu0 %v473, %s510
  %v512 = vpop.permute.xlu0 %511
  %s514 = sor.u32 256, 80
  %515 = vbcast.lane.b32.xlu0 %v473, %s514
  %v516 = vpop.permute.xlu0 %515
  %s518 = sor.u32 256, 88
  %519 = vbcast.lane.b32.xlu0 %v473, %s518
  %v520 = vpop.permute.xlu0 %519
  %s522 = sor.u32 256, 96
  %523 = vbcast.lane.b32.xlu0 %v473, %s522
  %v524 = vpop.permute.xlu0 %523
  %s526 = sor.u32 256, 104
  %527 = vbcast.lane.b32.xlu0 %v473, %s526
  %v528 = vpop.permute.xlu0 %527
  %s530 = sor.u32 256, 112
  %531 = vbcast.lane.b32.xlu0 %v473, %s530
  %v532 = vpop.permute.xlu0 %531
  %s534 = sor.u32 256, 120
  %535 = vbcast.lane.b32.xlu0 %v473, %s534
  %v536 = vpop.permute.xlu0 %535
  %v537 = vlaneseq
  %v538 = vshrl.u32 %v537, 7
  %v539 = vsub.s32 4, %v538
  %v540 = vrot.slane %v11, %v539
  %542 = vbcast.lane.b32.xlu0 %v540, 256
  %v543 = vpop.permute.xlu0 %542
  %s545 = sor.u32 256, 8
  %546 = vbcast.lane.b32.xlu0 %v540, %s545
  %v547 = vpop.permute.xlu0 %546
  %s549 = sor.u32 256, 16
  %550 = vbcast.lane.b32.xlu0 %v540, %s549
  %v551 = vpop.permute.xlu0 %550
  %s553 = sor.u32 256, 24
  %554 = vbcast.lane.b32.xlu0 %v540, %s553
  %v555 = vpop.permute.xlu0 %554
  %s557 = sor.u32 256, 32
  %558 = vbcast.lane.b32.xlu0 %v540, %s557
  %v559 = vpop.permute.xlu0 %558
  %s561 = sor.u32 256, 40
  %562 = vbcast.lane.b32.xlu0 %v540, %s561
  %v563 = vpop.permute.xlu0 %562
  %s565 = sor.u32 256, 48
  %566 = vbcast.lane.b32.xlu0 %v540, %s565
  %v567 = vpop.permute.xlu0 %566
  %s569 = sor.u32 256, 56
  %570 = vbcast.lane.b32.xlu0 %v540, %s569
  %v571 = vpop.permute.xlu0 %570
  %s573 = sor.u32 256, 64
  %574 = vbcast.lane.b32.xlu0 %v540, %s573
  %v575 = vpop.permute.xlu0 %574
  %s577 = sor.u32 256, 72
  %578 = vbcast.lane.b32.xlu0 %v540, %s577
  %v579 = vpop.permute.xlu0 %578
  %s581 = sor.u32 256, 80
  %582 = vbcast.lane.b32.xlu0 %v540, %s581
  %v583 = vpop.permute.xlu0 %582
  %s585 = sor.u32 256, 88
  %586 = vbcast.lane.b32.xlu0 %v540, %s585
  %v587 = vpop.permute.xlu0 %586
  %s589 = sor.u32 256, 96
  %590 = vbcast.lane.b32.xlu0 %v540, %s589
  %v591 = vpop.permute.xlu0 %590
  %s593 = sor.u32 256, 104
  %594 = vbcast.lane.b32.xlu0 %v540, %s593
  %v595 = vpop.permute.xlu0 %594
  %s597 = sor.u32 256, 112
  %598 = vbcast.lane.b32.xlu0 %v540, %s597
  %v599 = vpop.permute.xlu0 %598
  %s601 = sor.u32 256, 120
  %602 = vbcast.lane.b32.xlu0 %v540, %s601
  %v603 = vpop.permute.xlu0 %602
  %v604 = vlaneseq
  %v605 = vshrl.u32 %v604, 7
  %v606 = vsub.s32 5, %v605
  %v607 = vrot.slane %v11, %v606
  %609 = vbcast.lane.b32.xlu0 %v607, 256
  %v610 = vpop.permute.xlu0 %609
  %s612 = sor.u32 256, 8
  %613 = vbcast.lane.b32.xlu0 %v607, %s612
  %v614 = vpop.permute.xlu0 %613
  %s616 = sor.u32 256, 16
  %617 = vbcast.lane.b32.xlu0 %v607, %s616
  %v618 = vpop.permute.xlu0 %617
  %s620 = sor.u32 256, 24
  %621 = vbcast.lane.b32.xlu0 %v607, %s620
  %v622 = vpop.permute.xlu0 %621
  %s624 = sor.u32 256, 32
  %625 = vbcast.lane.b32.xlu0 %v607, %s624
  %v626 = vpop.permute.xlu0 %625
  %s628 = sor.u32 256, 40
  %629 = vbcast.lane.b32.xlu0 %v607, %s628
  %v630 = vpop.permute.xlu0 %629
  %s632 = sor.u32 256, 48
  %633 = vbcast.lane.b32.xlu0 %v607, %s632
  %v634 = vpop.permute.xlu0 %633
  %s636 = sor.u32 256, 56
  %637 = vbcast.lane.b32.xlu0 %v607, %s636
  %v638 = vpop.permute.xlu0 %637
  %s640 = sor.u32 256, 64
  %641 = vbcast.lane.b32.xlu0 %v607, %s640
  %v642 = vpop.permute.xlu0 %641
  %s644 = sor.u32 256, 72
  %645 = vbcast.lane.b32.xlu0 %v607, %s644
  %v646 = vpop.permute.xlu0 %645
  %s648 = sor.u32 256, 80
  %649 = vbcast.lane.b32.xlu0 %v607, %s648
  %v650 = vpop.permute.xlu0 %649
  %s652 = sor.u32 256, 88
  %653 = vbcast.lane.b32.xlu0 %v607, %s652
  %v654 = vpop.permute.xlu0 %653
  %s656 = sor.u32 256, 96
  %657 = vbcast.lane.b32.xlu0 %v607, %s656
  %v658 = vpop.permute.xlu0 %657
  %s660 = sor.u32 256, 104
  %661 = vbcast.lane.b32.xlu0 %v607, %s660
  %v662 = vpop.permute.xlu0 %661
  %s664 = sor.u32 256, 112
  %665 = vbcast.lane.b32.xlu0 %v607, %s664
  %v666 = vpop.permute.xlu0 %665
  %s668 = sor.u32 256, 120
  %669 = vbcast.lane.b32.xlu0 %v607, %s668
  %v670 = vpop.permute.xlu0 %669
  %v671 = vlaneseq
  %v672 = vshrl.u32 %v671, 7
  %v673 = vsub.s32 6, %v672
  %v674 = vrot.slane %v11, %v673
  %676 = vbcast.lane.b32.xlu0 %v674, 256
  %v677 = vpop.permute.xlu0 %676
  %s679 = sor.u32 256, 8
  %680 = vbcast.lane.b32.xlu0 %v674, %s679
  %v681 = vpop.permute.xlu0 %680
  %s683 = sor.u32 256, 16
  %684 = vbcast.lane.b32.xlu0 %v674, %s683
  %v685 = vpop.permute.xlu0 %684
  %s687 = sor.u32 256, 24
  %688 = vbcast.lane.b32.xlu0 %v674, %s687
  %v689 = vpop.permute.xlu0 %688
  %s691 = sor.u32 256, 32
  %692 = vbcast.lane.b32.xlu0 %v674, %s691
  %v693 = vpop.permute.xlu0 %692
  %s695 = sor.u32 256, 40
  %696 = vbcast.lane.b32.xlu0 %v674, %s695
  %v697 = vpop.permute.xlu0 %696
  %s699 = sor.u32 256, 48
  %700 = vbcast.lane.b32.xlu0 %v674, %s699
  %v701 = vpop.permute.xlu0 %700
  %s703 = sor.u32 256, 56
  %704 = vbcast.lane.b32.xlu0 %v674, %s703
  %v705 = vpop.permute.xlu0 %704
  %s707 = sor.u32 256, 64
  %708 = vbcast.lane.b32.xlu0 %v674, %s707
  %v709 = vpop.permute.xlu0 %708
  %s711 = sor.u32 256, 72
  %712 = vbcast.lane.b32.xlu0 %v674, %s711
  %v713 = vpop.permute.xlu0 %712
  %s715 = sor.u32 256, 80
  %716 = vbcast.lane.b32.xlu0 %v674, %s715
  %v717 = vpop.permute.xlu0 %716
  %s719 = sor.u32 256, 88
  %720 = vbcast.lane.b32.xlu0 %v674, %s719
  %v721 = vpop.permute.xlu0 %720
  %s723 = sor.u32 256, 96
  %724 = vbcast.lane.b32.xlu0 %v674, %s723
  %v725 = vpop.permute.xlu0 %724
  %s727 = sor.u32 256, 104
  %728 = vbcast.lane.b32.xlu0 %v674, %s727
  %v729 = vpop.permute.xlu0 %728
  %s731 = sor.u32 256, 112
  %732 = vbcast.lane.b32.xlu0 %v674, %s731
  %v733 = vpop.permute.xlu0 %732
  %s735 = sor.u32 256, 120
  %736 = vbcast.lane.b32.xlu0 %v674, %s735
  %v737 = vpop.permute.xlu0 %736
  %v738 = vlaneseq
  %v739 = vshrl.u32 %v738, 7
  %v740 = vsub.s32 7, %v739
  %v741 = vrot.slane %v11, %v740
  %743 = vbcast.lane.b32.xlu0 %v741, 256
  %v744 = vpop.permute.xlu0 %743
  %s746 = sor.u32 256, 8
  %747 = vbcast.lane.b32.xlu0 %v741, %s746
  %v748 = vpop.permute.xlu0 %747
  %s750 = sor.u32 256, 16
  %751 = vbcast.lane.b32.xlu0 %v741, %s750
  %v752 = vpop.permute.xlu0 %751
  %s754 = sor.u32 256, 24
  %755 = vbcast.lane.b32.xlu0 %v741, %s754
  %v756 = vpop.permute.xlu0 %755
  %s758 = sor.u32 256, 32
  %759 = vbcast.lane.b32.xlu0 %v741, %s758
  %v760 = vpop.permute.xlu0 %759
  %s762 = sor.u32 256, 40
  %763 = vbcast.lane.b32.xlu0 %v741, %s762
  %v764 = vpop.permute.xlu0 %763
  %s766 = sor.u32 256, 48
  %767 = vbcast.lane.b32.xlu0 %v741, %s766
  %v768 = vpop.permute.xlu0 %767
  %s770 = sor.u32 256, 56
  %771 = vbcast.lane.b32.xlu0 %v741, %s770
  %v772 = vpop.permute.xlu0 %771
  %s774 = sor.u32 256, 64
  %775 = vbcast.lane.b32.xlu0 %v741, %s774
  %v776 = vpop.permute.xlu0 %775
  %s778 = sor.u32 256, 72
  %779 = vbcast.lane.b32.xlu0 %v741, %s778
  %v780 = vpop.permute.xlu0 %779
  %s782 = sor.u32 256, 80
  %783 = vbcast.lane.b32.xlu0 %v741, %s782
  %v784 = vpop.permute.xlu0 %783
  %s786 = sor.u32 256, 88
  %787 = vbcast.lane.b32.xlu0 %v741, %s786
  %v788 = vpop.permute.xlu0 %787
  %s790 = sor.u32 256, 96
  %791 = vbcast.lane.b32.xlu0 %v741, %s790
  %v792 = vpop.permute.xlu0 %791
  %s794 = sor.u32 256, 104
  %795 = vbcast.lane.b32.xlu0 %v741, %s794
  %v796 = vpop.permute.xlu0 %795
  %s798 = sor.u32 256, 112
  %799 = vbcast.lane.b32.xlu0 %v741, %s798
  %v800 = vpop.permute.xlu0 %799
  %s802 = sor.u32 256, 120
  %803 = vbcast.lane.b32.xlu0 %v741, %s802
  %v804 = vpop.permute.xlu0 %803
  %v805 = vlaneseq
  %v806 = vshrl.u32 %v805, 7
  %v807 = vsub.s32 0, %v806
  %v808 = vrot.slane %v12, %v807
  %810 = vbcast.lane.b32.xlu0 %v808, 256
  %v811 = vpop.permute.xlu0 %810
  %s813 = sor.u32 256, 8
  %814 = vbcast.lane.b32.xlu0 %v808, %s813
  %v815 = vpop.permute.xlu0 %814
  %s817 = sor.u32 256, 16
  %818 = vbcast.lane.b32.xlu0 %v808, %s817
  %v819 = vpop.permute.xlu0 %818
  %s821 = sor.u32 256, 24
  %822 = vbcast.lane.b32.xlu0 %v808, %s821
  %v823 = vpop.permute.xlu0 %822
  %s825 = sor.u32 256, 32
  %826 = vbcast.lane.b32.xlu0 %v808, %s825
  %v827 = vpop.permute.xlu0 %826
  %s829 = sor.u32 256, 40
  %830 = vbcast.lane.b32.xlu0 %v808, %s829
  %v831 = vpop.permute.xlu0 %830
  %s833 = sor.u32 256, 48
  %834 = vbcast.lane.b32.xlu0 %v808, %s833
  %v835 = vpop.permute.xlu0 %834
  %s837 = sor.u32 256, 56
  %838 = vbcast.lane.b32.xlu0 %v808, %s837
  %v839 = vpop.permute.xlu0 %838
  %s841 = sor.u32 256, 64
  %842 = vbcast.lane.b32.xlu0 %v808, %s841
  %v843 = vpop.permute.xlu0 %842
  %s845 = sor.u32 256, 72
  %846 = vbcast.lane.b32.xlu0 %v808, %s845
  %v847 = vpop.permute.xlu0 %846
  %s849 = sor.u32 256, 80
  %850 = vbcast.lane.b32.xlu0 %v808, %s849
  %v851 = vpop.permute.xlu0 %850
  %s853 = sor.u32 256, 88
  %854 = vbcast.lane.b32.xlu0 %v808, %s853
  %v855 = vpop.permute.xlu0 %854
  %s857 = sor.u32 256, 96
  %858 = vbcast.lane.b32.xlu0 %v808, %s857
  %v859 = vpop.permute.xlu0 %858
  %s861 = sor.u32 256, 104
  %862 = vbcast.lane.b32.xlu0 %v808, %s861
  %v863 = vpop.permute.xlu0 %862
  %s865 = sor.u32 256, 112
  %866 = vbcast.lane.b32.xlu0 %v808, %s865
  %v867 = vpop.permute.xlu0 %866
  %s869 = sor.u32 256, 120
  %870 = vbcast.lane.b32.xlu0 %v808, %s869
  %v871 = vpop.permute.xlu0 %870
  %v872 = vlaneseq
  %v873 = vshrl.u32 %v872, 7
  %v874 = vsub.s32 1, %v873
  %v875 = vrot.slane %v12, %v874
  %877 = vbcast.lane.b32.xlu0 %v875, 256
  %v878 = vpop.permute.xlu0 %877
  %s880 = sor.u32 256, 8
  %881 = vbcast.lane.b32.xlu0 %v875, %s880
  %v882 = vpop.permute.xlu0 %881
  %s884 = sor.u32 256, 16
  %885 = vbcast.lane.b32.xlu0 %v875, %s884
  %v886 = vpop.permute.xlu0 %885
  %s888 = sor.u32 256, 24
  %889 = vbcast.lane.b32.xlu0 %v875, %s888
  %v890 = vpop.permute.xlu0 %889
  %s892 = sor.u32 256, 32
  %893 = vbcast.lane.b32.xlu0 %v875, %s892
  %v894 = vpop.permute.xlu0 %893
  %s896 = sor.u32 256, 40
  %897 = vbcast.lane.b32.xlu0 %v875, %s896
  %v898 = vpop.permute.xlu0 %897
  %s900 = sor.u32 256, 48
  %901 = vbcast.lane.b32.xlu0 %v875, %s900
  %v902 = vpop.permute.xlu0 %901
  %s904 = sor.u32 256, 56
  %905 = vbcast.lane.b32.xlu0 %v875, %s904
  %v906 = vpop.permute.xlu0 %905
  %s908 = sor.u32 256, 64
  %909 = vbcast.lane.b32.xlu0 %v875, %s908
  %v910 = vpop.permute.xlu0 %909
  %s912 = sor.u32 256, 72
  %913 = vbcast.lane.b32.xlu0 %v875, %s912
  %v914 = vpop.permute.xlu0 %913
  %s916 = sor.u32 256, 80
  %917 = vbcast.lane.b32.xlu0 %v875, %s916
  %v918 = vpop.permute.xlu0 %917
  %s920 = sor.u32 256, 88
  %921 = vbcast.lane.b32.xlu0 %v875, %s920
  %v922 = vpop.permute.xlu0 %921
  %s924 = sor.u32 256, 96
  %925 = vbcast.lane.b32.xlu0 %v875, %s924
  %v926 = vpop.permute.xlu0 %925
  %s928 = sor.u32 256, 104
  %929 = vbcast.lane.b32.xlu0 %v875, %s928
  %v930 = vpop.permute.xlu0 %929
  %s932 = sor.u32 256, 112
  %933 = vbcast.lane.b32.xlu0 %v875, %s932
  %v934 = vpop.permute.xlu0 %933
  %s936 = sor.u32 256, 120
  %937 = vbcast.lane.b32.xlu0 %v875, %s936
  %v938 = vpop.permute.xlu0 %937
  %v939 = vlaneseq
  %v940 = vshrl.u32 %v939, 7
  %v941 = vsub.s32 2, %v940
  %v942 = vrot.slane %v12, %v941
  %944 = vbcast.lane.b32.xlu0 %v942, 256
  %v945 = vpop.permute.xlu0 %944
  %s947 = sor.u32 256, 8
  %948 = vbcast.lane.b32.xlu0 %v942, %s947
  %v949 = vpop.permute.xlu0 %948
  %s951 = sor.u32 256, 16
  %952 = vbcast.lane.b32.xlu0 %v942, %s951
  %v953 = vpop.permute.xlu0 %952
  %s955 = sor.u32 256, 24
  %956 = vbcast.lane.b32.xlu0 %v942, %s955
  %v957 = vpop.permute.xlu0 %956
  %s959 = sor.u32 256, 32
  %960 = vbcast.lane.b32.xlu0 %v942, %s959
  %v961 = vpop.permute.xlu0 %960
  %s963 = sor.u32 256, 40
  %964 = vbcast.lane.b32.xlu0 %v942, %s963
  %v965 = vpop.permute.xlu0 %964
  %s967 = sor.u32 256, 48
  %968 = vbcast.lane.b32.xlu0 %v942, %s967
  %v969 = vpop.permute.xlu0 %968
  %s971 = sor.u32 256, 56
  %972 = vbcast.lane.b32.xlu0 %v942, %s971
  %v973 = vpop.permute.xlu0 %972
  %s975 = sor.u32 256, 64
  %976 = vbcast.lane.b32.xlu0 %v942, %s975
  %v977 = vpop.permute.xlu0 %976
  %s979 = sor.u32 256, 72
  %980 = vbcast.lane.b32.xlu0 %v942, %s979
  %v981 = vpop.permute.xlu0 %980
  %s983 = sor.u32 256, 80
  %984 = vbcast.lane.b32.xlu0 %v942, %s983
  %v985 = vpop.permute.xlu0 %984
  %s987 = sor.u32 256, 88
  %988 = vbcast.lane.b32.xlu0 %v942, %s987
  %v989 = vpop.permute.xlu0 %988
  %s991 = sor.u32 256, 96
  %992 = vbcast.lane.b32.xlu0 %v942, %s991
  %v993 = vpop.permute.xlu0 %992
  %s995 = sor.u32 256, 104
  %996 = vbcast.lane.b32.xlu0 %v942, %s995
  %v997 = vpop.permute.xlu0 %996
  %s999 = sor.u32 256, 112
  %1000 = vbcast.lane.b32.xlu0 %v942, %s999
  %v1001 = vpop.permute.xlu0 %1000
  %s1003 = sor.u32 256, 120
  %1004 = vbcast.lane.b32.xlu0 %v942, %s1003
  %v1005 = vpop.permute.xlu0 %1004
  %v1006 = vlaneseq
  %v1007 = vshrl.u32 %v1006, 7
  %v1008 = vsub.s32 3, %v1007
  %v1009 = vrot.slane %v12, %v1008
  %1011 = vbcast.lane.b32.xlu0 %v1009, 256
  %v1012 = vpop.permute.xlu0 %1011
  %s1014 = sor.u32 256, 8
  %1015 = vbcast.lane.b32.xlu0 %v1009, %s1014
  %v1016 = vpop.permute.xlu0 %1015
  %s1018 = sor.u32 256, 16
  %1019 = vbcast.lane.b32.xlu0 %v1009, %s1018
  %v1020 = vpop.permute.xlu0 %1019
  %s1022 = sor.u32 256, 24
  %1023 = vbcast.lane.b32.xlu0 %v1009, %s1022
  %v1024 = vpop.permute.xlu0 %1023
  %s1026 = sor.u32 256, 32
  %1027 = vbcast.lane.b32.xlu0 %v1009, %s1026
  %v1028 = vpop.permute.xlu0 %1027
  %s1030 = sor.u32 256, 40
  %1031 = vbcast.lane.b32.xlu0 %v1009, %s1030
  %v1032 = vpop.permute.xlu0 %1031
  %s1034 = sor.u32 256, 48
  %1035 = vbcast.lane.b32.xlu0 %v1009, %s1034
  %v1036 = vpop.permute.xlu0 %1035
  %s1038 = sor.u32 256, 56
  %1039 = vbcast.lane.b32.xlu0 %v1009, %s1038
  %v1040 = vpop.permute.xlu0 %1039
  %s1042 = sor.u32 256, 64
  %1043 = vbcast.lane.b32.xlu0 %v1009, %s1042
  %v1044 = vpop.permute.xlu0 %1043
  %s1046 = sor.u32 256, 72
  %1047 = vbcast.lane.b32.xlu0 %v1009, %s1046
  %v1048 = vpop.permute.xlu0 %1047
  %s1050 = sor.u32 256, 80
  %1051 = vbcast.lane.b32.xlu0 %v1009, %s1050
  %v1052 = vpop.permute.xlu0 %1051
  %s1054 = sor.u32 256, 88
  %1055 = vbcast.lane.b32.xlu0 %v1009, %s1054
  %v1056 = vpop.permute.xlu0 %1055
  %s1058 = sor.u32 256, 96
  %1059 = vbcast.lane.b32.xlu0 %v1009, %s1058
  %v1060 = vpop.permute.xlu0 %1059
  %s1062 = sor.u32 256, 104
  %1063 = vbcast.lane.b32.xlu0 %v1009, %s1062
  %v1064 = vpop.permute.xlu0 %1063
  %s1066 = sor.u32 256, 112
  %1067 = vbcast.lane.b32.xlu0 %v1009, %s1066
  %v1068 = vpop.permute.xlu0 %1067
  %s1070 = sor.u32 256, 120
  %1071 = vbcast.lane.b32.xlu0 %v1009, %s1070
  %v1072 = vpop.permute.xlu0 %1071
  %v1073 = vlaneseq
  %v1074 = vshrl.u32 %v1073, 7
  %v1075 = vsub.s32 4, %v1074
  %v1076 = vrot.slane %v12, %v1075
  %1078 = vbcast.lane.b32.xlu0 %v1076, 256
  %v1079 = vpop.permute.xlu0 %1078
  %s1081 = sor.u32 256, 8
  %1082 = vbcast.lane.b32.xlu0 %v1076, %s1081
  %v1083 = vpop.permute.xlu0 %1082
  %s1085 = sor.u32 256, 16
  %1086 = vbcast.lane.b32.xlu0 %v1076, %s1085
  %v1087 = vpop.permute.xlu0 %1086
  %s1089 = sor.u32 256, 24
  %1090 = vbcast.lane.b32.xlu0 %v1076, %s1089
  %v1091 = vpop.permute.xlu0 %1090
  %s1093 = sor.u32 256, 32
  %1094 = vbcast.lane.b32.xlu0 %v1076, %s1093
  %v1095 = vpop.permute.xlu0 %1094
  %s1097 = sor.u32 256, 40
  %1098 = vbcast.lane.b32.xlu0 %v1076, %s1097
  %v1099 = vpop.permute.xlu0 %1098
  %s1101 = sor.u32 256, 48
  %1102 = vbcast.lane.b32.xlu0 %v1076, %s1101
  %v1103 = vpop.permute.xlu0 %1102
  %s1105 = sor.u32 256, 56
  %1106 = vbcast.lane.b32.xlu0 %v1076, %s1105
  %v1107 = vpop.permute.xlu0 %1106
  %s1109 = sor.u32 256, 64
  %1110 = vbcast.lane.b32.xlu0 %v1076, %s1109
  %v1111 = vpop.permute.xlu0 %1110
  %s1113 = sor.u32 256, 72
  %1114 = vbcast.lane.b32.xlu0 %v1076, %s1113
  %v1115 = vpop.permute.xlu0 %1114
  %s1117 = sor.u32 256, 80
  %1118 = vbcast.lane.b32.xlu0 %v1076, %s1117
  %v1119 = vpop.permute.xlu0 %1118
  %s1121 = sor.u32 256, 88
  %1122 = vbcast.lane.b32.xlu0 %v1076, %s1121
  %v1123 = vpop.permute.xlu0 %1122
  %s1125 = sor.u32 256, 96
  %1126 = vbcast.lane.b32.xlu0 %v1076, %s1125
  %v1127 = vpop.permute.xlu0 %1126
  %s1129 = sor.u32 256, 104
  %1130 = vbcast.lane.b32.xlu0 %v1076, %s1129
  %v1131 = vpop.permute.xlu0 %1130
  %s1133 = sor.u32 256, 112
  %1134 = vbcast.lane.b32.xlu0 %v1076, %s1133
  %v1135 = vpop.permute.xlu0 %1134
  %s1137 = sor.u32 256, 120
  %1138 = vbcast.lane.b32.xlu0 %v1076, %s1137
  %v1139 = vpop.permute.xlu0 %1138
  %v1140 = vlaneseq
  %v1141 = vshrl.u32 %v1140, 7
  %v1142 = vsub.s32 5, %v1141
  %v1143 = vrot.slane %v12, %v1142
  %1145 = vbcast.lane.b32.xlu0 %v1143, 256
  %v1146 = vpop.permute.xlu0 %1145
  %s1148 = sor.u32 256, 8
  %1149 = vbcast.lane.b32.xlu0 %v1143, %s1148
  %v1150 = vpop.permute.xlu0 %1149
  %s1152 = sor.u32 256, 16
  %1153 = vbcast.lane.b32.xlu0 %v1143, %s1152
  %v1154 = vpop.permute.xlu0 %1153
  %s1156 = sor.u32 256, 24
  %1157 = vbcast.lane.b32.xlu0 %v1143, %s1156
  %v1158 = vpop.permute.xlu0 %1157
  %s1160 = sor.u32 256, 32
  %1161 = vbcast.lane.b32.xlu0 %v1143, %s1160
  %v1162 = vpop.permute.xlu0 %1161
  %s1164 = sor.u32 256, 40
  %1165 = vbcast.lane.b32.xlu0 %v1143, %s1164
  %v1166 = vpop.permute.xlu0 %1165
  %s1168 = sor.u32 256, 48
  %1169 = vbcast.lane.b32.xlu0 %v1143, %s1168
  %v1170 = vpop.permute.xlu0 %1169
  %s1172 = sor.u32 256, 56
  %1173 = vbcast.lane.b32.xlu0 %v1143, %s1172
  %v1174 = vpop.permute.xlu0 %1173
  %s1176 = sor.u32 256, 64
  %1177 = vbcast.lane.b32.xlu0 %v1143, %s1176
  %v1178 = vpop.permute.xlu0 %1177
  %s1180 = sor.u32 256, 72
  %1181 = vbcast.lane.b32.xlu0 %v1143, %s1180
  %v1182 = vpop.permute.xlu0 %1181
  %s1184 = sor.u32 256, 80
  %1185 = vbcast.lane.b32.xlu0 %v1143, %s1184
  %v1186 = vpop.permute.xlu0 %1185
  %s1188 = sor.u32 256, 88
  %1189 = vbcast.lane.b32.xlu0 %v1143, %s1188
  %v1190 = vpop.permute.xlu0 %1189
  %s1192 = sor.u32 256, 96
  %1193 = vbcast.lane.b32.xlu0 %v1143, %s1192
  %v1194 = vpop.permute.xlu0 %1193
  %s1196 = sor.u32 256, 104
  %1197 = vbcast.lane.b32.xlu0 %v1143, %s1196
  %v1198 = vpop.permute.xlu0 %1197
  %s1200 = sor.u32 256, 112
  %1201 = vbcast.lane.b32.xlu0 %v1143, %s1200
  %v1202 = vpop.permute.xlu0 %1201
  %s1204 = sor.u32 256, 120
  %1205 = vbcast.lane.b32.xlu0 %v1143, %s1204
  %v1206 = vpop.permute.xlu0 %1205
  %v1207 = vlaneseq
  %v1208 = vshrl.u32 %v1207, 7
  %v1209 = vsub.s32 6, %v1208
  %v1210 = vrot.slane %v12, %v1209
  %1212 = vbcast.lane.b32.xlu0 %v1210, 256
  %v1213 = vpop.permute.xlu0 %1212
  %s1215 = sor.u32 256, 8
  %1216 = vbcast.lane.b32.xlu0 %v1210, %s1215
  %v1217 = vpop.permute.xlu0 %1216
  %s1219 = sor.u32 256, 16
  %1220 = vbcast.lane.b32.xlu0 %v1210, %s1219
  %v1221 = vpop.permute.xlu0 %1220
  %s1223 = sor.u32 256, 24
  %1224 = vbcast.lane.b32.xlu0 %v1210, %s1223
  %v1225 = vpop.permute.xlu0 %1224
  %s1227 = sor.u32 256, 32
  %1228 = vbcast.lane.b32.xlu0 %v1210, %s1227
  %v1229 = vpop.permute.xlu0 %1228
  %s1231 = sor.u32 256, 40
  %1232 = vbcast.lane.b32.xlu0 %v1210, %s1231
  %v1233 = vpop.permute.xlu0 %1232
  %s1235 = sor.u32 256, 48
  %1236 = vbcast.lane.b32.xlu0 %v1210, %s1235
  %v1237 = vpop.permute.xlu0 %1236
  %s1239 = sor.u32 256, 56
  %1240 = vbcast.lane.b32.xlu0 %v1210, %s1239
  %v1241 = vpop.permute.xlu0 %1240
  %s1243 = sor.u32 256, 64
  %1244 = vbcast.lane.b32.xlu0 %v1210, %s1243
  %v1245 = vpop.permute.xlu0 %1244
  %s1247 = sor.u32 256, 72
  %1248 = vbcast.lane.b32.xlu0 %v1210, %s1247
  %v1249 = vpop.permute.xlu0 %1248
  %s1251 = sor.u32 256, 80
  %1252 = vbcast.lane.b32.xlu0 %v1210, %s1251
  %v1253 = vpop.permute.xlu0 %1252
  %s1255 = sor.u32 256, 88
  %1256 = vbcast.lane.b32.xlu0 %v1210, %s1255
  %v1257 = vpop.permute.xlu0 %1256
  %s1259 = sor.u32 256, 96
  %1260 = vbcast.lane.b32.xlu0 %v1210, %s1259
  %v1261 = vpop.permute.xlu0 %1260
  %s1263 = sor.u32 256, 104
  %1264 = vbcast.lane.b32.xlu0 %v1210, %s1263
  %v1265 = vpop.permute.xlu0 %1264
  %s1267 = sor.u32 256, 112
  %1268 = vbcast.lane.b32.xlu0 %v1210, %s1267
  %v1269 = vpop.permute.xlu0 %1268
  %s1271 = sor.u32 256, 120
  %1272 = vbcast.lane.b32.xlu0 %v1210, %s1271
  %v1273 = vpop.permute.xlu0 %1272
  %v1274 = vlaneseq
  %v1275 = vshrl.u32 %v1274, 7
  %v1276 = vsub.s32 7, %v1275
  %v1277 = vrot.slane %v12, %v1276
  %1279 = vbcast.lane.b32.xlu0 %v1277, 256
  %v1280 = vpop.permute.xlu0 %1279
  %s1282 = sor.u32 256, 8
  %1283 = vbcast.lane.b32.xlu0 %v1277, %s1282
  %v1284 = vpop.permute.xlu0 %1283
  %s1286 = sor.u32 256, 16
  %1287 = vbcast.lane.b32.xlu0 %v1277, %s1286
  %v1288 = vpop.permute.xlu0 %1287
  %s1290 = sor.u32 256, 24
  %1291 = vbcast.lane.b32.xlu0 %v1277, %s1290
  %v1292 = vpop.permute.xlu0 %1291
  %s1294 = sor.u32 256, 32
  %1295 = vbcast.lane.b32.xlu0 %v1277, %s1294
  %v1296 = vpop.permute.xlu0 %1295
  %s1298 = sor.u32 256, 40
  %1299 = vbcast.lane.b32.xlu0 %v1277, %s1298
  %v1300 = vpop.permute.xlu0 %1299
  %s1302 = sor.u32 256, 48
  %1303 = vbcast.lane.b32.xlu0 %v1277, %s1302
  %v1304 = vpop.permute.xlu0 %1303
  %s1306 = sor.u32 256, 56
  %1307 = vbcast.lane.b32.xlu0 %v1277, %s1306
  %v1308 = vpop.permute.xlu0 %1307
  %s1310 = sor.u32 256, 64
  %1311 = vbcast.lane.b32.xlu0 %v1277, %s1310
  %v1312 = vpop.permute.xlu0 %1311
  %s1314 = sor.u32 256, 72
  %1315 = vbcast.lane.b32.xlu0 %v1277, %s1314
  %v1316 = vpop.permute.xlu0 %1315
  %s1318 = sor.u32 256, 80
  %1319 = vbcast.lane.b32.xlu0 %v1277, %s1318
  %v1320 = vpop.permute.xlu0 %1319
  %s1322 = sor.u32 256, 88
  %1323 = vbcast.lane.b32.xlu0 %v1277, %s1322
  %v1324 = vpop.permute.xlu0 %1323
  %s1326 = sor.u32 256, 96
  %1327 = vbcast.lane.b32.xlu0 %v1277, %s1326
  %v1328 = vpop.permute.xlu0 %1327
  %s1330 = sor.u32 256, 104
  %1331 = vbcast.lane.b32.xlu0 %v1277, %s1330
  %v1332 = vpop.permute.xlu0 %1331
  %s1334 = sor.u32 256, 112
  %1335 = vbcast.lane.b32.xlu0 %v1277, %s1334
  %v1336 = vpop.permute.xlu0 %1335
  %s1338 = sor.u32 256, 120
  %1339 = vbcast.lane.b32.xlu0 %v1277, %s1338
  %v1340 = vpop.permute.xlu0 %1339
  %v1341 = vmul.f32 %v275, %v13
  %v1342 = vmul.f32 %v279, %v14
  %v1343 = vmul.f32 %v283, %v15
  %v1344 = vmul.f32 %v287, %v16
  %v1345 = vmul.f32 %v291, %v17
  %v1346 = vmul.f32 %v295, %v18
  %v1347 = vmul.f32 %v299, %v19
  %v1348 = vmul.f32 %v303, %v20
  %v1349 = vmul.f32 %v307, %v21
  %v1350 = vmul.f32 %v311, %v22
  %v1351 = vmul.f32 %v315, %v23
  %v1352 = vmul.f32 %v319, %v24
  %v1353 = vmul.f32 %v323, %v25
  %v1354 = vmul.f32 %v327, %v26
  %v1355 = vmul.f32 %v331, %v27
  %v1356 = vmul.f32 %v335, %v28
  %v1357 = vmul.f32 %v342, %v29
  %v1358 = vmul.f32 %v346, %v30
  %v1359 = vmul.f32 %v350, %v31
  %v1360 = vmul.f32 %v354, %v32
  %v1361 = vmul.f32 %v358, %v33
  %v1362 = vmul.f32 %v362, %v34
  %v1363 = vmul.f32 %v366, %v35
  %v1364 = vmul.f32 %v370, %v36
  %v1365 = vmul.f32 %v374, %v37
  %v1366 = vmul.f32 %v378, %v38
  %v1367 = vmul.f32 %v382, %v39
  %v1368 = vmul.f32 %v386, %v40
  %v1369 = vmul.f32 %v390, %v41
  %v1370 = vmul.f32 %v394, %v42
  %v1371 = vmul.f32 %v398, %v43
  %v1372 = vmul.f32 %v402, %v44
  %v1373 = vmul.f32 %v409, %v45
  %v1374 = vmul.f32 %v413, %v46
  %v1375 = vmul.f32 %v417, %v47
  %v1376 = vmul.f32 %v421, %v48
  %v1377 = vmul.f32 %v425, %v49
  %v1378 = vmul.f32 %v429, %v50
  %v1379 = vmul.f32 %v433, %v51
  %v1380 = vmul.f32 %v437, %v52
  %v1381 = vmul.f32 %v441, %v53
  %v1382 = vmul.f32 %v445, %v54
  %v1383 = vmul.f32 %v449, %v55
  %v1384 = vmul.f32 %v453, %v56
  %v1385 = vmul.f32 %v457, %v57
  %v1386 = vmul.f32 %v461, %v58
  %v1387 = vmul.f32 %v465, %v59
  %v1388 = vmul.f32 %v469, %v60
  %v1389 = vmul.f32 %v476, %v61
  %v1390 = vmul.f32 %v480, %v62
  %v1391 = vmul.f32 %v484, %v63
  %v1392 = vmul.f32 %v488, %v64
  %v1393 = vmul.f32 %v492, %v65
  %v1394 = vmul.f32 %v496, %v66
  %v1395 = vmul.f32 %v500, %v67
  %v1396 = vmul.f32 %v504, %v68
  %v1397 = vmul.f32 %v508, %v69
  %v1398 = vmul.f32 %v512, %v70
  %v1399 = vmul.f32 %v516, %v71
  %v1400 = vmul.f32 %v520, %v72
  %v1401 = vmul.f32 %v524, %v73
  %v1402 = vmul.f32 %v528, %v74
  %v1403 = vmul.f32 %v532, %v75
  %v1404 = vmul.f32 %v536, %v76
  %v1405 = vmul.f32 %v543, %v77
  %v1406 = vmul.f32 %v547, %v78
  %v1407 = vmul.f32 %v551, %v79
  %v1408 = vmul.f32 %v555, %v80
  %v1409 = vmul.f32 %v559, %v81
  %v1410 = vmul.f32 %v563, %v82
  %v1411 = vmul.f32 %v567, %v83
  %v1412 = vmul.f32 %v571, %v84
  %v1413 = vmul.f32 %v575, %v85
  %v1414 = vmul.f32 %v579, %v86
  %v1415 = vmul.f32 %v583, %v87
  %v1416 = vmul.f32 %v587, %v88
  %v1417 = vmul.f32 %v591, %v89
  %v1418 = vmul.f32 %v595, %v90
  %v1419 = vmul.f32 %v599, %v91
  %v1420 = vmul.f32 %v603, %v92
  %v1421 = vmul.f32 %v610, %v93
  %v1422 = vmul.f32 %v614, %v94
  %v1423 = vmul.f32 %v618, %v95
  %v1424 = vmul.f32 %v622, %v96
  %v1425 = vmul.f32 %v626, %v97
  %v1426 = vmul.f32 %v630, %v98
  %v1427 = vmul.f32 %v634, %v99
  %v1428 = vmul.f32 %v638, %v100
  %v1429 = vmul.f32 %v642, %v101
  %v1430 = vmul.f32 %v646, %v102
  %v1431 = vmul.f32 %v650, %v103
  %v1432 = vmul.f32 %v654, %v104
  %v1433 = vmul.f32 %v658, %v105
  %v1434 = vmul.f32 %v662, %v106
  %v1435 = vmul.f32 %v666, %v107
  %v1436 = vmul.f32 %v670, %v108
  %v1437 = vmul.f32 %v677, %v109
  %v1438 = vmul.f32 %v681, %v110
  %v1439 = vmul.f32 %v685, %v111
  %v1440 = vmul.f32 %v689, %v112
  %v1441 = vmul.f32 %v693, %v113
  %v1442 = vmul.f32 %v697, %v114
  %v1443 = vmul.f32 %v701, %v115
  %v1444 = vmul.f32 %v705, %v116
  %v1445 = vmul.f32 %v709, %v117
  %v1446 = vmul.f32 %v713, %v118
  %v1447 = vmul.f32 %v717, %v119
  %v1448 = vmul.f32 %v721, %v120
  %v1449 = vmul.f32 %v725, %v121
  %v1450 = vmul.f32 %v729, %v122
  %v1451 = vmul.f32 %v733, %v123
  %v1452 = vmul.f32 %v737, %v124
  %v1453 = vmul.f32 %v744, %v125
  %v1454 = vmul.f32 %v748, %v126
  %v1455 = vmul.f32 %v752, %v127
  %v1456 = vmul.f32 %v756, %v128
  %v1457 = vmul.f32 %v760, %v129
  %v1458 = vmul.f32 %v764, %v130
  %v1459 = vmul.f32 %v768, %v131
  %v1460 = vmul.f32 %v772, %v132
  %v1461 = vmul.f32 %v776, %v133
  %v1462 = vmul.f32 %v780, %v134
  %v1463 = vmul.f32 %v784, %v135
  %v1464 = vmul.f32 %v788, %v136
  %v1465 = vmul.f32 %v792, %v137
  %v1466 = vmul.f32 %v796, %v138
  %v1467 = vmul.f32 %v800, %v139
  %v1468 = vmul.f32 %v804, %v140
  %v1469 = vmul.f32 %v811, %v141
  %v1470 = vmul.f32 %v815, %v142
  %v1471 = vmul.f32 %v819, %v143
  %v1472 = vmul.f32 %v823, %v144
  %v1473 = vmul.f32 %v827, %v145
  %v1474 = vmul.f32 %v831, %v146
  %v1475 = vmul.f32 %v835, %v147
  %v1476 = vmul.f32 %v839, %v148
  %v1477 = vmul.f32 %v843, %v149
  %v1478 = vmul.f32 %v847, %v150
  %v1479 = vmul.f32 %v851, %v151
  %v1480 = vmul.f32 %v855, %v152
  %v1481 = vmul.f32 %v859, %v153
  %v1482 = vmul.f32 %v863, %v154
  %v1483 = vmul.f32 %v867, %v155
  %v1484 = vmul.f32 %v871, %v156
  %v1485 = vmul.f32 %v878, %v157
  %v1486 = vmul.f32 %v882, %v158
  %v1487 = vmul.f32 %v886, %v159
  %v1488 = vmul.f32 %v890, %v160
  %v1489 = vmul.f32 %v894, %v161
  %v1490 = vmul.f32 %v898, %v162
  %v1491 = vmul.f32 %v902, %v163
  %v1492 = vmul.f32 %v906, %v164
  %v1493 = vmul.f32 %v910, %v165
  %v1494 = vmul.f32 %v914, %v166
  %v1495 = vmul.f32 %v918, %v167
  %v1496 = vmul.f32 %v922, %v168
  %v1497 = vmul.f32 %v926, %v169
  %v1498 = vmul.f32 %v930, %v170
  %v1499 = vmul.f32 %v934, %v171
  %v1500 = vmul.f32 %v938, %v172
  %v1501 = vmul.f32 %v945, %v173
  %v1502 = vmul.f32 %v949, %v174
  %v1503 = vmul.f32 %v953, %v175
  %v1504 = vmul.f32 %v957, %v176
  %v1505 = vmul.f32 %v961, %v177
  %v1506 = vmul.f32 %v965, %v178
  %v1507 = vmul.f32 %v969, %v179
  %v1508 = vmul.f32 %v973, %v180
  %v1509 = vmul.f32 %v977, %v181
  %v1510 = vmul.f32 %v981, %v182
  %v1511 = vmul.f32 %v985, %v183
  %v1512 = vmul.f32 %v989, %v184
  %v1513 = vmul.f32 %v993, %v185
  %v1514 = vmul.f32 %v997, %v186
  %v1515 = vmul.f32 %v1001, %v187
  %v1516 = vmul.f32 %v1005, %v188
  %v1517 = vmul.f32 %v1012, %v189
  %v1518 = vmul.f32 %v1016, %v190
  %v1519 = vmul.f32 %v1020, %v191
  %v1520 = vmul.f32 %v1024, %v192
  %v1521 = vmul.f32 %v1028, %v193
  %v1522 = vmul.f32 %v1032, %v194
  %v1523 = vmul.f32 %v1036, %v195
  %v1524 = vmul.f32 %v1040, %v196
  %v1525 = vmul.f32 %v1044, %v197
  %v1526 = vmul.f32 %v1048, %v198
  %v1527 = vmul.f32 %v1052, %v199
  %v1528 = vmul.f32 %v1056, %v200
  %v1529 = vmul.f32 %v1060, %v201
  %v1530 = vmul.f32 %v1064, %v202
  %v1531 = vmul.f32 %v1068, %v203
  %v1532 = vmul.f32 %v1072, %v204
  %v1533 = vmul.f32 %v1079, %v205
  %v1534 = vmul.f32 %v1083, %v206
  %v1535 = vmul.f32 %v1087, %v207
  %v1536 = vmul.f32 %v1091, %v208
  %v1537 = vmul.f32 %v1095, %v209
  %v1538 = vmul.f32 %v1099, %v210
  %v1539 = vmul.f32 %v1103, %v211
  %v1540 = vmul.f32 %v1107, %v212
  %v1541 = vmul.f32 %v1111, %v213
  %v1542 = vmul.f32 %v1115, %v214
  %v1543 = vmul.f32 %v1119, %v215
  %v1544 = vmul.f32 %v1123, %v216
  %v1545 = vmul.f32 %v1127, %v217
  %v1546 = vmul.f32 %v1131, %v218
  %v1547 = vmul.f32 %v1135, %v219
  %v1548 = vmul.f32 %v1139, %v220
  %v1549 = vmul.f32 %v1146, %v221
  %v1550 = vmul.f32 %v1150, %v222
  %v1551 = vmul.f32 %v1154, %v223
  %v1552 = vmul.f32 %v1158, %v224
  %v1553 = vmul.f32 %v1162, %v225
  %v1554 = vmul.f32 %v1166, %v226
  %v1555 = vmul.f32 %v1170, %v227
  %v1556 = vmul.f32 %v1174, %v228
  %v1557 = vmul.f32 %v1178, %v229
  %v1558 = vmul.f32 %v1182, %v230
  %v1559 = vmul.f32 %v1186, %v231
  %v1560 = vmul.f32 %v1190, %v232
  %v1561 = vmul.f32 %v1194, %v233
  %v1562 = vmul.f32 %v1198, %v234
  %v1563 = vmul.f32 %v1202, %v235
  %v1564 = vmul.f32 %v1206, %v236
  %v1565 = vmul.f32 %v1213, %v237
  %v1566 = vmul.f32 %v1217, %v238
  %v1567 = vmul.f32 %v1221, %v239
  %v1568 = vmul.f32 %v1225, %v240
  %v1569 = vmul.f32 %v1229, %v241
  %v1570 = vmul.f32 %v1233, %v242
  %v1571 = vmul.f32 %v1237, %v243
  %v1572 = vmul.f32 %v1241, %v244
  %v1573 = vmul.f32 %v1245, %v245
  %v1574 = vmul.f32 %v1249, %v246
  %v1575 = vmul.f32 %v1253, %v247
  %v1576 = vmul.f32 %v1257, %v248
  %v1577 = vmul.f32 %v1261, %v249
  %v1578 = vmul.f32 %v1265, %v250
  %v1579 = vmul.f32 %v1269, %v251
  %v1580 = vmul.f32 %v1273, %v252
  %v1581 = vmul.f32 %v1280, %v253
  %v1582 = vmul.f32 %v1284, %v254
  %v1583 = vmul.f32 %v1288, %v255
  %v1584 = vmul.f32 %v1292, %v256
  %v1585 = vmul.f32 %v1296, %v257
  %v1586 = vmul.f32 %v1300, %v258
  %v1587 = vmul.f32 %v1304, %v259
  %v1588 = vmul.f32 %v1308, %v260
  %v1589 = vmul.f32 %v1312, %v261
  %v1590 = vmul.f32 %v1316, %v262
  %v1591 = vmul.f32 %v1320, %v263
  %v1592 = vmul.f32 %v1324, %v264
  %v1593 = vmul.f32 %v1328, %v265
  %v1594 = vmul.f32 %v1332, %v266
  %v1595 = vmul.f32 %v1336, %v267
  %v1596 = vmul.f32 %v1340, %v268
  %v1597 = vadd.f32 %v1341, %v1342
  %v1598 = vadd.f32 %v1597, %v1343
  %v1599 = vadd.f32 %v1598, %v1344
  %v1600 = vadd.f32 %v1599, %v1345
  %v1601 = vadd.f32 %v1600, %v1346
  %v1602 = vadd.f32 %v1601, %v1347
  %v1603 = vadd.f32 %v1602, %v1348
  %v1604 = vadd.f32 %v1603, %v1349
  %v1605 = vadd.f32 %v1604, %v1350
  %v1606 = vadd.f32 %v1605, %v1351
  %v1607 = vadd.f32 %v1606, %v1352
  %v1608 = vadd.f32 %v1607, %v1353
  %v1609 = vadd.f32 %v1608, %v1354
  %v1610 = vadd.f32 %v1609, %v1355
  %v1611 = vadd.f32 %v1610, %v1356
  %v1612 = vrot.slane %v1611, 4
  %v1613 = vadd.f32 %v1611, %v1612
  %v1614 = vrot.slane %v1613, 2
  %v1615 = vadd.f32 %v1613, %v1614
  %v1616 = vrot.slane %v1615, 1
  %v1617 = vadd.f32 %v1615, %v1616
  %v1618 = vadd.f32 %v1357, %v1358
  %v1619 = vadd.f32 %v1618, %v1359
  %v1620 = vadd.f32 %v1619, %v1360
  %v1621 = vadd.f32 %v1620, %v1361
  %v1622 = vadd.f32 %v1621, %v1362
  %v1623 = vadd.f32 %v1622, %v1363
  %v1624 = vadd.f32 %v1623, %v1364
  %v1625 = vadd.f32 %v1624, %v1365
  %v1626 = vadd.f32 %v1625, %v1366
  %v1627 = vadd.f32 %v1626, %v1367
  %v1628 = vadd.f32 %v1627, %v1368
  %v1629 = vadd.f32 %v1628, %v1369
  %v1630 = vadd.f32 %v1629, %v1370
  %v1631 = vadd.f32 %v1630, %v1371
  %v1632 = vadd.f32 %v1631, %v1372
  %v1633 = vrot.slane %v1632, 4
  %v1634 = vadd.f32 %v1632, %v1633
  %v1635 = vrot.slane %v1634, 2
  %v1636 = vadd.f32 %v1634, %v1635
  %v1637 = vrot.slane %v1636, 1
  %v1638 = vadd.f32 %v1636, %v1637
  %v1639 = vadd.f32 %v1373, %v1374
  %v1640 = vadd.f32 %v1639, %v1375
  %v1641 = vadd.f32 %v1640, %v1376
  %v1642 = vadd.f32 %v1641, %v1377
  %v1643 = vadd.f32 %v1642, %v1378
  %v1644 = vadd.f32 %v1643, %v1379
  %v1645 = vadd.f32 %v1644, %v1380
  %v1646 = vadd.f32 %v1645, %v1381
  %v1647 = vadd.f32 %v1646, %v1382
  %v1648 = vadd.f32 %v1647, %v1383
  %v1649 = vadd.f32 %v1648, %v1384
  %v1650 = vadd.f32 %v1649, %v1385
  %v1651 = vadd.f32 %v1650, %v1386
  %v1652 = vadd.f32 %v1651, %v1387
  %v1653 = vadd.f32 %v1652, %v1388
  %v1654 = vrot.slane %v1653, 4
  %v1655 = vadd.f32 %v1653, %v1654
  %v1656 = vrot.slane %v1655, 2
  %v1657 = vadd.f32 %v1655, %v1656
  %v1658 = vrot.slane %v1657, 1
  %v1659 = vadd.f32 %v1657, %v1658
  %v1660 = vadd.f32 %v1389, %v1390
  %v1661 = vadd.f32 %v1660, %v1391
  %v1662 = vadd.f32 %v1661, %v1392
  %v1663 = vadd.f32 %v1662, %v1393
  %v1664 = vadd.f32 %v1663, %v1394
  %v1665 = vadd.f32 %v1664, %v1395
  %v1666 = vadd.f32 %v1665, %v1396
  %v1667 = vadd.f32 %v1666, %v1397
  %v1668 = vadd.f32 %v1667, %v1398
  %v1669 = vadd.f32 %v1668, %v1399
  %v1670 = vadd.f32 %v1669, %v1400
  %v1671 = vadd.f32 %v1670, %v1401
  %v1672 = vadd.f32 %v1671, %v1402
  %v1673 = vadd.f32 %v1672, %v1403
  %v1674 = vadd.f32 %v1673, %v1404
  %v1675 = vrot.slane %v1674, 4
  %v1676 = vadd.f32 %v1674, %v1675
  %v1677 = vrot.slane %v1676, 2
  %v1678 = vadd.f32 %v1676, %v1677
  %v1679 = vrot.slane %v1678, 1
  %v1680 = vadd.f32 %v1678, %v1679
  %v1681 = vadd.f32 %v1405, %v1406
  %v1682 = vadd.f32 %v1681, %v1407
  %v1683 = vadd.f32 %v1682, %v1408
  %v1684 = vadd.f32 %v1683, %v1409
  %v1685 = vadd.f32 %v1684, %v1410
  %v1686 = vadd.f32 %v1685, %v1411
  %v1687 = vadd.f32 %v1686, %v1412
  %v1688 = vadd.f32 %v1687, %v1413
  %v1689 = vadd.f32 %v1688, %v1414
  %v1690 = vadd.f32 %v1689, %v1415
  %v1691 = vadd.f32 %v1690, %v1416
  %v1692 = vadd.f32 %v1691, %v1417
  %v1693 = vadd.f32 %v1692, %v1418
  %v1694 = vadd.f32 %v1693, %v1419
  %v1695 = vadd.f32 %v1694, %v1420
  %v1696 = vrot.slane %v1695, 4
  %v1697 = vadd.f32 %v1695, %v1696
  %v1698 = vrot.slane %v1697, 2
  %v1699 = vadd.f32 %v1697, %v1698
  %v1700 = vrot.slane %v1699, 1
  %v1701 = vadd.f32 %v1699, %v1700
  %v1702 = vadd.f32 %v1421, %v1422
  %v1703 = vadd.f32 %v1702, %v1423
  %v1704 = vadd.f32 %v1703, %v1424
  %v1705 = vadd.f32 %v1704, %v1425
  %v1706 = vadd.f32 %v1705, %v1426
  %v1707 = vadd.f32 %v1706, %v1427
  %v1708 = vadd.f32 %v1707, %v1428
  %v1709 = vadd.f32 %v1708, %v1429
  %v1710 = vadd.f32 %v1709, %v1430
  %v1711 = vadd.f32 %v1710, %v1431
  %v1712 = vadd.f32 %v1711, %v1432
  %v1713 = vadd.f32 %v1712, %v1433
  %v1714 = vadd.f32 %v1713, %v1434
  %v1715 = vadd.f32 %v1714, %v1435
  %v1716 = vadd.f32 %v1715, %v1436
  %v1717 = vrot.slane %v1716, 4
  %v1718 = vadd.f32 %v1716, %v1717
  %v1719 = vrot.slane %v1718, 2
  %v1720 = vadd.f32 %v1718, %v1719
  %v1721 = vrot.slane %v1720, 1
  %v1722 = vadd.f32 %v1720, %v1721
  %v1723 = vadd.f32 %v1437, %v1438
  %v1724 = vadd.f32 %v1723, %v1439
  %v1725 = vadd.f32 %v1724, %v1440
  %v1726 = vadd.f32 %v1725, %v1441
  %v1727 = vadd.f32 %v1726, %v1442
  %v1728 = vadd.f32 %v1727, %v1443
  %v1729 = vadd.f32 %v1728, %v1444
  %v1730 = vadd.f32 %v1729, %v1445
  %v1731 = vadd.f32 %v1730, %v1446
  %v1732 = vadd.f32 %v1731, %v1447
  %v1733 = vadd.f32 %v1732, %v1448
  %v1734 = vadd.f32 %v1733, %v1449
  %v1735 = vadd.f32 %v1734, %v1450
  %v1736 = vadd.f32 %v1735, %v1451
  %v1737 = vadd.f32 %v1736, %v1452
  %v1738 = vrot.slane %v1737, 4
  %v1739 = vadd.f32 %v1737, %v1738
  %v1740 = vrot.slane %v1739, 2
  %v1741 = vadd.f32 %v1739, %v1740
  %v1742 = vrot.slane %v1741, 1
  %v1743 = vadd.f32 %v1741, %v1742
  %v1744 = vadd.f32 %v1453, %v1454
  %v1745 = vadd.f32 %v1744, %v1455
  %v1746 = vadd.f32 %v1745, %v1456
  %v1747 = vadd.f32 %v1746, %v1457
  %v1748 = vadd.f32 %v1747, %v1458
  %v1749 = vadd.f32 %v1748, %v1459
  %v1750 = vadd.f32 %v1749, %v1460
  %v1751 = vadd.f32 %v1750, %v1461
  %v1752 = vadd.f32 %v1751, %v1462
  %v1753 = vadd.f32 %v1752, %v1463
  %v1754 = vadd.f32 %v1753, %v1464
  %v1755 = vadd.f32 %v1754, %v1465
  %v1756 = vadd.f32 %v1755, %v1466
  %v1757 = vadd.f32 %v1756, %v1467
  %v1758 = vadd.f32 %v1757, %v1468
  %v1759 = vrot.slane %v1758, 4
  %v1760 = vadd.f32 %v1758, %v1759
  %v1761 = vrot.slane %v1760, 2
  %v1762 = vadd.f32 %v1760, %v1761
  %v1763 = vrot.slane %v1762, 1
  %v1764 = vadd.f32 %v1762, %v1763
  %v1765 = vadd.f32 %v1469, %v1470
  %v1766 = vadd.f32 %v1765, %v1471
  %v1767 = vadd.f32 %v1766, %v1472
  %v1768 = vadd.f32 %v1767, %v1473
  %v1769 = vadd.f32 %v1768, %v1474
  %v1770 = vadd.f32 %v1769, %v1475
  %v1771 = vadd.f32 %v1770, %v1476
  %v1772 = vadd.f32 %v1771, %v1477
  %v1773 = vadd.f32 %v1772, %v1478
  %v1774 = vadd.f32 %v1773, %v1479
  %v1775 = vadd.f32 %v1774, %v1480
  %v1776 = vadd.f32 %v1775, %v1481
  %v1777 = vadd.f32 %v1776, %v1482
  %v1778 = vadd.f32 %v1777, %v1483
  %v1779 = vadd.f32 %v1778, %v1484
  %v1780 = vrot.slane %v1779, 4
  %v1781 = vadd.f32 %v1779, %v1780
  %v1782 = vrot.slane %v1781, 2
  %v1783 = vadd.f32 %v1781, %v1782
  %v1784 = vrot.slane %v1783, 1
  %v1785 = vadd.f32 %v1783, %v1784
  %v1786 = vadd.f32 %v1485, %v1486
  %v1787 = vadd.f32 %v1786, %v1487
  %v1788 = vadd.f32 %v1787, %v1488
  %v1789 = vadd.f32 %v1788, %v1489
  %v1790 = vadd.f32 %v1789, %v1490
  %v1791 = vadd.f32 %v1790, %v1491
  %v1792 = vadd.f32 %v1791, %v1492
  %v1793 = vadd.f32 %v1792, %v1493
  %v1794 = vadd.f32 %v1793, %v1494
  %v1795 = vadd.f32 %v1794, %v1495
  %v1796 = vadd.f32 %v1795, %v1496
  %v1797 = vadd.f32 %v1796, %v1497
  %v1798 = vadd.f32 %v1797, %v1498
  %v1799 = vadd.f32 %v1798, %v1499
  %v1800 = vadd.f32 %v1799, %v1500
  %v1801 = vrot.slane %v1800, 4
  %v1802 = vadd.f32 %v1800, %v1801
  %v1803 = vrot.slane %v1802, 2
  %v1804 = vadd.f32 %v1802, %v1803
  %v1805 = vrot.slane %v1804, 1
  %v1806 = vadd.f32 %v1804, %v1805
  %v1807 = vadd.f32 %v1501, %v1502
  %v1808 = vadd.f32 %v1807, %v1503
  %v1809 = vadd.f32 %v1808, %v1504
  %v1810 = vadd.f32 %v1809, %v1505
  %v1811 = vadd.f32 %v1810, %v1506
  %v1812 = vadd.f32 %v1811, %v1507
  %v1813 = vadd.f32 %v1812, %v1508
  %v1814 = vadd.f32 %v1813, %v1509
  %v1815 = vadd.f32 %v1814, %v1510
  %v1816 = vadd.f32 %v1815, %v1511
  %v1817 = vadd.f32 %v1816, %v1512
  %v1818 = vadd.f32 %v1817, %v1513
  %v1819 = vadd.f32 %v1818, %v1514
  %v1820 = vadd.f32 %v1819, %v1515
  %v1821 = vadd.f32 %v1820, %v1516
  %v1822 = vrot.slane %v1821, 4
  %v1823 = vadd.f32 %v1821, %v1822
  %v1824 = vrot.slane %v1823, 2
  %v1825 = vadd.f32 %v1823, %v1824
  %v1826 = vrot.slane %v1825, 1
  %v1827 = vadd.f32 %v1825, %v1826
  %v1828 = vadd.f32 %v1517, %v1518
  %v1829 = vadd.f32 %v1828, %v1519
  %v1830 = vadd.f32 %v1829, %v1520
  %v1831 = vadd.f32 %v1830, %v1521
  %v1832 = vadd.f32 %v1831, %v1522
  %v1833 = vadd.f32 %v1832, %v1523
  %v1834 = vadd.f32 %v1833, %v1524
  %v1835 = vadd.f32 %v1834, %v1525
  %v1836 = vadd.f32 %v1835, %v1526
  %v1837 = vadd.f32 %v1836, %v1527
  %v1838 = vadd.f32 %v1837, %v1528
  %v1839 = vadd.f32 %v1838, %v1529
  %v1840 = vadd.f32 %v1839, %v1530
  %v1841 = vadd.f32 %v1840, %v1531
  %v1842 = vadd.f32 %v1841, %v1532
  %v1843 = vrot.slane %v1842, 4
  %v1844 = vadd.f32 %v1842, %v1843
  %v1845 = vrot.slane %v1844, 2
  %v1846 = vadd.f32 %v1844, %v1845
  %v1847 = vrot.slane %v1846, 1
  %v1848 = vadd.f32 %v1846, %v1847
  %v1849 = vadd.f32 %v1533, %v1534
  %v1850 = vadd.f32 %v1849, %v1535
  %v1851 = vadd.f32 %v1850, %v1536
  %v1852 = vadd.f32 %v1851, %v1537
  %v1853 = vadd.f32 %v1852, %v1538
  %v1854 = vadd.f32 %v1853, %v1539
  %v1855 = vadd.f32 %v1854, %v1540
  %v1856 = vadd.f32 %v1855, %v1541
  %v1857 = vadd.f32 %v1856, %v1542
  %v1858 = vadd.f32 %v1857, %v1543
  %v1859 = vadd.f32 %v1858, %v1544
  %v1860 = vadd.f32 %v1859, %v1545
  %v1861 = vadd.f32 %v1860, %v1546
  %v1862 = vadd.f32 %v1861, %v1547
  %v1863 = vadd.f32 %v1862, %v1548
  %v1864 = vrot.slane %v1863, 4
  %v1865 = vadd.f32 %v1863, %v1864
  %v1866 = vrot.slane %v1865, 2
  %v1867 = vadd.f32 %v1865, %v1866
  %v1868 = vrot.slane %v1867, 1
  %v1869 = vadd.f32 %v1867, %v1868
  %v1870 = vadd.f32 %v1549, %v1550
  %v1871 = vadd.f32 %v1870, %v1551
  %v1872 = vadd.f32 %v1871, %v1552
  %v1873 = vadd.f32 %v1872, %v1553
  %v1874 = vadd.f32 %v1873, %v1554
  %v1875 = vadd.f32 %v1874, %v1555
  %v1876 = vadd.f32 %v1875, %v1556
  %v1877 = vadd.f32 %v1876, %v1557
  %v1878 = vadd.f32 %v1877, %v1558
  %v1879 = vadd.f32 %v1878, %v1559
  %v1880 = vadd.f32 %v1879, %v1560
  %v1881 = vadd.f32 %v1880, %v1561
  %v1882 = vadd.f32 %v1881, %v1562
  %v1883 = vadd.f32 %v1882, %v1563
  %v1884 = vadd.f32 %v1883, %v1564
  %v1885 = vrot.slane %v1884, 4
  %v1886 = vadd.f32 %v1884, %v1885
  %v1887 = vrot.slane %v1886, 2
  %v1888 = vadd.f32 %v1886, %v1887
  %v1889 = vrot.slane %v1888, 1
  %v1890 = vadd.f32 %v1888, %v1889
  %v1891 = vadd.f32 %v1565, %v1566
  %v1892 = vadd.f32 %v1891, %v1567
  %v1893 = vadd.f32 %v1892, %v1568
  %v1894 = vadd.f32 %v1893, %v1569
  %v1895 = vadd.f32 %v1894, %v1570
  %v1896 = vadd.f32 %v1895, %v1571
  %v1897 = vadd.f32 %v1896, %v1572
  %v1898 = vadd.f32 %v1897, %v1573
  %v1899 = vadd.f32 %v1898, %v1574
  %v1900 = vadd.f32 %v1899, %v1575
  %v1901 = vadd.f32 %v1900, %v1576
  %v1902 = vadd.f32 %v1901, %v1577
  %v1903 = vadd.f32 %v1902, %v1578
  %v1904 = vadd.f32 %v1903, %v1579
  %v1905 = vadd.f32 %v1904, %v1580
  %v1906 = vrot.slane %v1905, 4
  %v1907 = vadd.f32 %v1905, %v1906
  %v1908 = vrot.slane %v1907, 2
  %v1909 = vadd.f32 %v1907, %v1908
  %v1910 = vrot.slane %v1909, 1
  %v1911 = vadd.f32 %v1909, %v1910
  %v1912 = vadd.f32 %v1581, %v1582
  %v1913 = vadd.f32 %v1912, %v1583
  %v1914 = vadd.f32 %v1913, %v1584
  %v1915 = vadd.f32 %v1914, %v1585
  %v1916 = vadd.f32 %v1915, %v1586
  %v1917 = vadd.f32 %v1916, %v1587
  %v1918 = vadd.f32 %v1917, %v1588
  %v1919 = vadd.f32 %v1918, %v1589
  %v1920 = vadd.f32 %v1919, %v1590
  %v1921 = vadd.f32 %v1920, %v1591
  %v1922 = vadd.f32 %v1921, %v1592
  %v1923 = vadd.f32 %v1922, %v1593
  %v1924 = vadd.f32 %v1923, %v1594
  %v1925 = vadd.f32 %v1924, %v1595
  %v1926 = vadd.f32 %v1925, %v1596
  %v1927 = vrot.slane %v1926, 4
  %v1928 = vadd.f32 %v1926, %v1927
  %v1929 = vrot.slane %v1928, 2
  %v1930 = vadd.f32 %v1928, %v1929
  %v1931 = vrot.slane %v1930, 1
  %v1932 = vadd.f32 %v1930, %v1931
  %v1933 = vpack.c.bf16 %v1617, %v1617
  %v1934 = vpack.c.bf16 %v1638, %v1638
  %v1935 = vpack.c.bf16 %v1659, %v1659
  %v1936 = vpack.c.bf16 %v1680, %v1680
  %v1937 = vpack.c.bf16 %v1701, %v1701
  %v1938 = vpack.c.bf16 %v1722, %v1722
  %v1939 = vpack.c.bf16 %v1743, %v1743
  %v1940 = vpack.c.bf16 %v1764, %v1764
  %v1941 = vpack.c.bf16 %v1785, %v1785
  %v1942 = vpack.c.bf16 %v1806, %v1806
  %v1943 = vpack.c.bf16 %v1827, %v1827
  %v1944 = vpack.c.bf16 %v1848, %v1848
  %v1945 = vpack.c.bf16 %v1869, %v1869
  %v1946 = vpack.c.bf16 %v1890, %v1890
  %v1947 = vpack.c.bf16 %v1911, %v1911
  %v1948 = vpack.c.bf16 %v1932, %v1932
  %v1965 = vunpack.c.l.b16 %v1933
  %v1966 = vunpack.c.l.b16 %v1934
  %v1967 = vunpack.c.l.b16 %v1935
  %v1968 = vunpack.c.l.b16 %v1936
  %v1969 = vunpack.c.l.b16 %v1937
  %v1970 = vunpack.c.l.b16 %v1938
  %v1971 = vunpack.c.l.b16 %v1939
  %v1972 = vunpack.c.l.b16 %v1940
  %v1973 = vunpack.c.l.b16 %v1941
  %v1974 = vunpack.c.l.b16 %v1942
  %v1975 = vunpack.c.l.b16 %v1943
  %v1976 = vunpack.c.l.b16 %v1944
  %v1977 = vunpack.c.l.b16 %v1945
  %v1978 = vunpack.c.l.b16 %v1946
  %v1979 = vunpack.c.l.b16 %v1947
  %v1980 = vunpack.c.l.b16 %v1948
  %v1981 = vpack.c.b16 %v1965, %v1965
  %v1982 = vpack.c.b16 %v1966, %v1966
  %v1983 = vpack.c.b16 %v1967, %v1967
  %v1984 = vpack.c.b16 %v1968, %v1968
  %v1985 = vpack.c.b16 %v1969, %v1969
  %v1986 = vpack.c.b16 %v1970, %v1970
  %v1987 = vpack.c.b16 %v1971, %v1971
  %v1988 = vpack.c.b16 %v1972, %v1972
  %v1989 = vpack.c.b16 %v1973, %v1973
  %v1990 = vpack.c.b16 %v1974, %v1974
  %v1991 = vpack.c.b16 %v1975, %v1975
  %v1992 = vpack.c.b16 %v1976, %v1976
  %v1993 = vpack.c.b16 %v1977, %v1977
  %v1994 = vpack.c.b16 %v1978, %v1978
  %v1995 = vpack.c.b16 %v1979, %v1979
  %v1996 = vpack.c.b16 %v1980, %v1980
  %v1997 = vunpack.c.l.b16 %v1981
  %v1998 = vunpack.c.l.b16 %v1982
  %v1999 = vunpack.c.l.b16 %v1983
  %v2000 = vunpack.c.l.b16 %v1984
  %v2001 = vunpack.c.l.b16 %v1985
  %v2002 = vunpack.c.l.b16 %v1986
  %v2003 = vunpack.c.l.b16 %v1987
  %v2004 = vunpack.c.l.b16 %v1988
  %v2005 = vunpack.c.l.b16 %v1989
  %v2006 = vunpack.c.l.b16 %v1990
  %v2007 = vunpack.c.l.b16 %v1991
  %v2008 = vunpack.c.l.b16 %v1992
  %v2009 = vunpack.c.l.b16 %v1993
  %v2010 = vunpack.c.l.b16 %v1994
  %v2011 = vunpack.c.l.b16 %v1995
  %v2012 = vunpack.c.l.b16 %v1996
  %vm2013 = vcmask 1041409
  %v2014 = vsel %vm2013, %v1998, %v1997
  %vm2015 = vcmask 1042434
  %v2016 = vsel %vm2015, %v1999, %v2014
  %vm2017 = vcmask 1043459
  %v2018 = vsel %vm2017, %v2000, %v2016
  %vm2019 = vcmask 1044484
  %v2020 = vsel %vm2019, %v2001, %v2018
  %vm2021 = vcmask 1045509
  %v2022 = vsel %vm2021, %v2002, %v2020
  %vm2023 = vcmask 1046534
  %v2024 = vsel %vm2023, %v2003, %v2022
  %vm2025 = vcmask 1047559
  %v2026 = vsel %vm2025, %v2004, %v2024
  %v2027 = vsel %vm2013, %v2006, %v2005
  %v2028 = vsel %vm2015, %v2007, %v2027
  %v2029 = vsel %vm2017, %v2008, %v2028
  %v2030 = vsel %vm2019, %v2009, %v2029
  %v2031 = vsel %vm2021, %v2010, %v2030
  %v2032 = vsel %vm2023, %v2011, %v2031
  %v2033 = vsel %vm2025, %v2012, %v2032
  %v2034 = vpack.c.b16 %v2026, %v2026
  %v2035 = vpack.c.b16 %v2033, %v2033
  %2038 = vst [vmem:[%s2] sm:$0xf] %v2034
  %2039 = vst [vmem:[%s2 + $0x4] sm:$0xf] %v2035
  // Predicated region
  $region10: #{rotate3d_forward.2} parent=0 // pred_check
    _
  $region11: #{rotate3d_forward.2} parent=0 // pred_check_branch
    %2041 = sbr.rel (0) target = $region13
  $region12: #{rotate3d_forward.2} parent=0 // pred_region
    _
  $region13: #{rotate3d_forward.2} parent=0 // pred_fallthru
    _
  // Predicated region
  $region14: #{rotate3d_forward.2} parent=0 // pred_check
    _
  $region15: #{rotate3d_forward.2} parent=0 // pred_check_branch
    %2043 = sbr.rel (0) target = $region17
  $region16: #{rotate3d_forward.2} parent=0 // pred_region
    _
  $region17: #{rotate3d_forward.2} parent=0 // pred_fallthru
    _

// kernel: rotate3d_forward.3
$region0: #{rotate3d_forward.3}
  #allocation0 [shape = 'u32[]', space=smem, size = 0x4, offset = 0x4, fixed_abs, tag = 'smem constant byte address 0x4 - core index']
  #allocation1 [shape = 'u32[144,128]{1,0:T(1,128)}', space=vmem, size = 0x12000, scoped, tag = 'internal scratch']
  %s0 = inlined_call_operand.vmem [shape: bf16[16,128], index: 0, kind: input, shape index: {}]
  %s1 = inlined_call_operand.vmem [shape: bf16[1024,128], index: 1, kind: input, shape index: {}]
  %s2 = inlined_call_operand.vmem [shape: f32[1,1024], index: 2, kind: input, shape index: {}]
  %s3 = inlined_call_operand.hbm [shape: bf16[16,1024], index: 3, kind: output, shape index: {}]
  %s4 = sld [smem:[#allocation0]]
  $region22: #{rotate3d_forward.3} parent=0
    _
  %s6 = ssub.s32 1, %s4
  %s7 = scalar_select 0, %s6, %s4
  $region1: #{rotate3d_forward.3} parent=0
    #allocation2 [shape = 'u8[32768]{0}', space=vmem, size = 0x8000, scoped, tag = 'output window, operand 0, single buffered']
    #allocation3 [shape = 's32[1]{0}', space=sflag, size = 0x4, scoped, tag = 'scoped memory for rotate3d_forward.3']
    %8 = vsyncpa [#allocation3], 0
    // Predicated region
    $region2: #{rotate3d_forward.3} parent=1 // pred_check
      _
    $region3: #{rotate3d_forward.3} parent=1 // pred_check_branch
      %10 = sbr.rel (0) target = $region5
    $region4: #{rotate3d_forward.3} parent=1 // pred_region
      _
    $region5: #{rotate3d_forward.3} parent=1 // pred_fallthru
      _
    // Predicated region
    $region6: #{rotate3d_forward.3} parent=1 // pred_check
      _
    $region7: #{rotate3d_forward.3} parent=1 // pred_check_branch
      %12 = sbr.rel (0) target = $region9
    $region8: #{rotate3d_forward.3} parent=1 // pred_region
      _
    $region9: #{rotate3d_forward.3} parent=1 // pred_fallthru
      _
    // Predicated region
    $region10: #{rotate3d_forward.3} parent=1 // pred_check
      _
    $region11: #{rotate3d_forward.3} parent=1 // pred_check_branch
      %14 = sbr.rel (0) target = $region13
    $region12: #{rotate3d_forward.3} parent=1 // pred_region
      _
    $region13: #{rotate3d_forward.3} parent=1 // pred_fallthru
      _
    %v16 = vld [vmem:[%s0] sm:$0xf]
    %v17 = vld [vmem:[%s0 + $0x4] sm:$0xf]
    %v18 = vld [vmem:[%s1] sm:$0xf]
    %v19 = vld [vmem:[%s1 + $0x4] sm:$0xf]
    %v20 = vld [vmem:[%s1 + $0x8] sm:$0xf]
    %v21 = vld [vmem:[%s1 + $0xc] sm:$0xf]
    %v22 = vld [vmem:[%s1 + $0x10] sm:$0xf]
    %v23 = vld [vmem:[%s1 + $0x14] sm:$0xf]
    %v24 = vld [vmem:[%s1 + $0x18] sm:$0xf]
    %v25 = vld [vmem:[%s1 + $0x1c] sm:$0xf]
    %v26 = vld [vmem:[%s1 + $0x20] sm:$0xf]
    %v27 = vld [vmem:[%s1 + $0x24] sm:$0xf]
    %v28 = vld [vmem:[%s1 + $0x28] sm:$0xf]
    %v29 = vld [vmem:[%s1 + $0x2c] sm:$0xf]
    %v30 = vld [vmem:[%s1 + $0x30] sm:$0xf]
    %v31 = vld [vmem:[%s1 + $0x34] sm:$0xf]
    %v32 = vld [vmem:[%s1 + $0x38] sm:$0xf]
    %v33 = vld [vmem:[%s1 + $0x3c] sm:$0xf]
    %v34 = vld [vmem:[%s1 + $0x40] sm:$0xf]
    %v35 = vld [vmem:[%s1 + $0x44] sm:$0xf]
    %v36 = vld [vmem:[%s1 + $0x48] sm:$0xf]
    %v37 = vld [vmem:[%s1 + $0x4c] sm:$0xf]
    %v38 = vld [vmem:[%s1 + $0x50] sm:$0xf]
    %v39 = vld [vmem:[%s1 + $0x54] sm:$0xf]
    %v40 = vld [vmem:[%s1 + $0x58] sm:$0xf]
    %v41 = vld [vmem:[%s1 + $0x5c] sm:$0xf]
    %v42 = vld [vmem:[%s1 + $0x60] sm:$0xf]
    %v43 = vld [vmem:[%s1 + $0x64] sm:$0xf]
    %v44 = vld [vmem:[%s1 + $0x68] sm:$0xf]
    %v45 = vld [vmem:[%s1 + $0x6c] sm:$0xf]
    %v46 = vld [vmem:[%s1 + $0x70] sm:$0xf]
    %v47 = vld [vmem:[%s1 + $0x74] sm:$0xf]
    %v48 = vld [vmem:[%s1 + $0x78] sm:$0xf]
    %v49 = vld [vmem:[%s1 + $0x7c] sm:$0xf]
    %v50 = vld [vmem:[%s1 + $0x80] sm:$0xf]
    %v51 = vld [vmem:[%s1 + $0x84] sm:$0xf]
    %v52 = vld [vmem:[%s1 + $0x88] sm:$0xf]
    %v53 = vld [vmem:[%s1 + $0x8c] sm:$0xf]
    %v54 = vld [vmem:[%s1 + $0x90] sm:$0xf]
    %v55 = vld [vmem:[%s1 + $0x94] sm:$0xf]
    %v56 = vld [vmem:[%s1 + $0x98] sm:$0xf]
    %v57 = vld [vmem:[%s1 + $0x9c] sm:$0xf]
    %v58 = vld [vmem:[%s1 + $0xa0] sm:$0xf]
    %v59 = vld [vmem:[%s1 + $0xa4] sm:$0xf]
    %v60 = vld [vmem:[%s1 + $0xa8] sm:$0xf]
    %v61 = vld [vmem:[%s1 + $0xac] sm:$0xf]
    %v62 = vld [vmem:[%s1 + $0xb0] sm:$0xf]
    %v63 = vld [vmem:[%s1 + $0xb4] sm:$0xf]
    %v64 = vld [vmem:[%s1 + $0xb8] sm:$0xf]
    %v65 = vld [vmem:[%s1 + $0xbc] sm:$0xf]
    %v66 = vld [vmem:[%s1 + $0xc0] sm:$0xf]
    %v67 = vld [vmem:[%s1 + $0xc4] sm:$0xf]
    %v68 = vld [vmem:[%s1 + $0xc8] sm:$0xf]
    %v69 = vld [vmem:[%s1 + $0xcc] sm:$0xf]
    %v70 = vld [vmem:[%s1 + $0xd0] sm:$0xf]
    %v71 = vld [vmem:[%s1 + $0xd4] sm:$0xf]
    %v72 = vld [vmem:[%s1 + $0xd8] sm:$0xf]
    %v73 = vld [vmem:[%s1 + $0xdc] sm:$0xf]
    %v74 = vld [vmem:[%s1 + $0xe0] sm:$0xf]
    %v75 = vld [vmem:[%s1 + $0xe4] sm:$0xf]
    %v76 = vld [vmem:[%s1 + $0xe8] sm:$0xf]
    %v77 = vld [vmem:[%s1 + $0xec] sm:$0xf]
    %v78 = vld [vmem:[%s1 + $0xf0] sm:$0xf]
    %v79 = vld [vmem:[%s1 + $0xf4] sm:$0xf]
    %v80 = vld [vmem:[%s1 + $0xf8] sm:$0xf]
    %v81 = vld [vmem:[%s1 + $0xfc] sm:$0xf]
    %v82 = vld [vmem:[%s1 + $0x100] sm:$0xf]
    %v83 = vld [vmem:[%s1 + $0x104] sm:$0xf]
    %v84 = vld [vmem:[%s1 + $0x108] sm:$0xf]
    %v85 = vld [vmem:[%s1 + $0x10c] sm:$0xf]
    %v86 = vld [vmem:[%s1 + $0x110] sm:$0xf]
    %v87 = vld [vmem:[%s1 + $0x114] sm:$0xf]
    %v88 = vld [vmem:[%s1 + $0x118] sm:$0xf]
    %v89 = vld [vmem:[%s1 + $0x11c] sm:$0xf]
    %v90 = vld [vmem:[%s1 + $0x120] sm:$0xf]
    %v91 = vld [vmem:[%s1 + $0x124] sm:$0xf]
    %v92 = vld [vmem:[%s1 + $0x128] sm:$0xf]
    %v93 = vld [vmem:[%s1 + $0x12c] sm:$0xf]
    %v94 = vld [vmem:[%s1 + $0x130] sm:$0xf]
    %v95 = vld [vmem:[%s1 + $0x134] sm:$0xf]
    %v96 = vld [vmem:[%s1 + $0x138] sm:$0xf]
    %v97 = vld [vmem:[%s1 + $0x13c] sm:$0xf]
    %v98 = vld [vmem:[%s1 + $0x140] sm:$0xf]
    %v99 = vld [vmem:[%s1 + $0x144] sm:$0xf]
    %v100 = vld [vmem:[%s1 + $0x148] sm:$0xf]
    %v101 = vld [vmem:[%s1 + $0x14c] sm:$0xf]
    %v102 = vld [vmem:[%s1 + $0x150] sm:$0xf]
    %v103 = vld [vmem:[%s1 + $0x154] sm:$0xf]
    %v104 = vld [vmem:[%s1 + $0x158] sm:$0xf]
    %v105 = vld [vmem:[%s1 + $0x15c] sm:$0xf]
    %v106 = vld [vmem:[%s1 + $0x160] sm:$0xf]
    %v107 = vld [vmem:[%s1 + $0x164] sm:$0xf]
    %v108 = vld [vmem:[%s1 + $0x168] sm:$0xf]
    %v109 = vld [vmem:[%s1 + $0x16c] sm:$0xf]
    %v110 = vld [vmem:[%s1 + $0x170] sm:$0xf]
    %v111 = vld [vmem:[%s1 + $0x174] sm:$0xf]
    %v112 = vld [vmem:[%s1 + $0x178] sm:$0xf]
    %v113 = vld [vmem:[%s1 + $0x17c] sm:$0xf]
    %v114 = vld [vmem:[%s1 + $0x180] sm:$0xf]
    %v115 = vld [vmem:[%s1 + $0x184] sm:$0xf]
    %v116 = vld [vmem:[%s1 + $0x188] sm:$0xf]
    %v117 = vld [vmem:[%s1 + $0x18c] sm:$0xf]
    %v118 = vld [vmem:[%s1 + $0x190] sm:$0xf]
    %v119 = vld [vmem:[%s1 + $0x194] sm:$0xf]
    %v120 = vld [vmem:[%s1 + $0x198] sm:$0xf]
    %v121 = vld [vmem:[%s1 + $0x19c] sm:$0xf]
    %v122 = vld [vmem:[%s1 + $0x1a0] sm:$0xf]
    %v123 = vld [vmem:[%s1 + $0x1a4] sm:$0xf]
    %v124 = vld [vmem:[%s1 + $0x1a8] sm:$0xf]
    %v125 = vld [vmem:[%s1 + $0x1ac] sm:$0xf]
    %v126 = vld [vmem:[%s1 + $0x1b0] sm:$0xf]
    %v127 = vld [vmem:[%s1 + $0x1b4] sm:$0xf]
    %v128 = vld [vmem:[%s1 + $0x1b8] sm:$0xf]
    %v129 = vld [vmem:[%s1 + $0x1bc] sm:$0xf]
    %v130 = vld [vmem:[%s1 + $0x1c0] sm:$0xf]
    %v131 = vld [vmem:[%s1 + $0x1c4] sm:$0xf]
    %v132 = vld [vmem:[%s1 + $0x1c8] sm:$0xf]
    %v133 = vld [vmem:[%s1 + $0x1cc] sm:$0xf]
    %v134 = vld [vmem:[%s1 + $0x1d0] sm:$0xf]
    %v135 = vld [vmem:[%s1 + $0x1d4] sm:$0xf]
    %v136 = vld [vmem:[%s1 + $0x1d8] sm:$0xf]
    %v137 = vld [vmem:[%s1 + $0x1dc] sm:$0xf]
    %v138 = vld [vmem:[%s1 + $0x1e0] sm:$0xf]
    %v139 = vld [vmem:[%s1 + $0x1e4] sm:$0xf]
    %v140 = vld [vmem:[%s1 + $0x1e8] sm:$0xf]
    %v141 = vld [vmem:[%s1 + $0x1ec] sm:$0xf]
    %v142 = vld [vmem:[%s1 + $0x1f0] sm:$0xf]
    %v143 = vld [vmem:[%s1 + $0x1f4] sm:$0xf]
    %v144 = vld [vmem:[%s1 + $0x1f8] sm:$0xf]
    %v145 = vld [vmem:[%s1 + $0x1fc] sm:$0xf]
    %v146 = vld [vmem:[%s2] sm:$0xff]
    %v148 = vlaneseq
    %v149 = vshrl.u32 %v148, 7
    %v150 = vsub.s32 0, %v149
    %v151 = vrot.slane %v146, %v150
    %v152 = vlaneseq
    %v153 = vshrl.u32 %v152, 7
    %v154 = vsub.s32 1, %v153
    %v155 = vrot.slane %v146, %v154
    %v156 = vlaneseq
    %v157 = vshrl.u32 %v156, 7
    %v158 = vsub.s32 2, %v157
    %v159 = vrot.slane %v146, %v158
    %v160 = vlaneseq
    %v161 = vshrl.u32 %v160, 7
    %v162 = vsub.s32 3, %v161
    %v163 = vrot.slane %v146, %v162
    %v164 = vlaneseq
    %v165 = vshrl.u32 %v164, 7
    %v166 = vsub.s32 4, %v165
    %v167 = vrot.slane %v146, %v166
    %v168 = vlaneseq
    %v169 = vshrl.u32 %v168, 7
    %v170 = vsub.s32 5, %v169
    %v171 = vrot.slane %v146, %v170
    %v172 = vlaneseq
    %v173 = vshrl.u32 %v172, 7
    %v174 = vsub.s32 6, %v173
    %v175 = vrot.slane %v146, %v174
    %v176 = vlaneseq
    %v177 = vshrl.u32 %v176, 7
    %v178 = vsub.s32 7, %v177
    %v179 = vrot.slane %v146, %v178
    %v190 = vunpack.c.l.b16 %v16
    %v191 = vunpack.c.l.b16 %v17
    %v192 = vpack.c.b16 %v191, %v190
    %v322 = vunpack.c.l.b16 %v18
    %v323 = vunpack.c.l.b16 %v19
    %v324 = vunpack.c.l.b16 %v20
    %v325 = vunpack.c.l.b16 %v21
    %v326 = vunpack.c.l.b16 %v22
    %v327 = vunpack.c.l.b16 %v23
    %v328 = vunpack.c.l.b16 %v24
    %v329 = vunpack.c.l.b16 %v25
    %v330 = vunpack.c.l.b16 %v26
    %v331 = vunpack.c.l.b16 %v27
    %v332 = vunpack.c.l.b16 %v28
    %v333 = vunpack.c.l.b16 %v29
    %v334 = vunpack.c.l.b16 %v30
    %v335 = vunpack.c.l.b16 %v31
    %v336 = vunpack.c.l.b16 %v32
    %v337 = vunpack.c.l.b16 %v33
    %v338 = vunpack.c.l.b16 %v34
    %v339 = vunpack.c.l.b16 %v35
    %v340 = vunpack.c.l.b16 %v36
    %v341 = vunpack.c.l.b16 %v37
    %v342 = vunpack.c.l.b16 %v38
    %v343 = vunpack.c.l.b16 %v39
    %v344 = vunpack.c.l.b16 %v40
    %v345 = vunpack.c.l.b16 %v41
    %v346 = vunpack.c.l.b16 %v42
    %v347 = vunpack.c.l.b16 %v43
    %v348 = vunpack.c.l.b16 %v44
    %v349 = vunpack.c.l.b16 %v45
    %v350 = vunpack.c.l.b16 %v46
    %v351 = vunpack.c.l.b16 %v47
    %v352 = vunpack.c.l.b16 %v48
    %v353 = vunpack.c.l.b16 %v49
    %v354 = vunpack.c.l.b16 %v50
    %v355 = vunpack.c.l.b16 %v51
    %v356 = vunpack.c.l.b16 %v52
    %v357 = vunpack.c.l.b16 %v53
    %v358 = vunpack.c.l.b16 %v54
    %v359 = vunpack.c.l.b16 %v55
    %v360 = vunpack.c.l.b16 %v56
    %v361 = vunpack.c.l.b16 %v57
    %v362 = vunpack.c.l.b16 %v58
    %v363 = vunpack.c.l.b16 %v59
    %v364 = vunpack.c.l.b16 %v60
    %v365 = vunpack.c.l.b16 %v61
    %v366 = vunpack.c.l.b16 %v62
    %v367 = vunpack.c.l.b16 %v63
    %v368 = vunpack.c.l.b16 %v64
    %v369 = vunpack.c.l.b16 %v65
    %v370 = vunpack.c.l.b16 %v66
    %v371 = vunpack.c.l.b16 %v67
    %v372 = vunpack.c.l.b16 %v68
    %v373 = vunpack.c.l.b16 %v69
    %v374 = vunpack.c.l.b16 %v70
    %v375 = vunpack.c.l.b16 %v71
    %v376 = vunpack.c.l.b16 %v72
    %v377 = vunpack.c.l.b16 %v73
    %v378 = vunpack.c.l.b16 %v74
    %v379 = vunpack.c.l.b16 %v75
    %v380 = vunpack.c.l.b16 %v76
    %v381 = vunpack.c.l.b16 %v77
    %v382 = vunpack.c.l.b16 %v78
    %v383 = vunpack.c.l.b16 %v79
    %v384 = vunpack.c.l.b16 %v80
    %v385 = vunpack.c.l.b16 %v81
    %v386 = vunpack.c.l.b16 %v82
    %v387 = vunpack.c.l.b16 %v83
    %v388 = vunpack.c.l.b16 %v84
    %v389 = vunpack.c.l.b16 %v85
    %v390 = vunpack.c.l.b16 %v86
    %v391 = vunpack.c.l.b16 %v87
    %v392 = vunpack.c.l.b16 %v88
    %v393 = vunpack.c.l.b16 %v89
    %v394 = vunpack.c.l.b16 %v90
    %v395 = vunpack.c.l.b16 %v91
    %v396 = vunpack.c.l.b16 %v92
    %v397 = vunpack.c.l.b16 %v93
    %v398 = vunpack.c.l.b16 %v94
    %v399 = vunpack.c.l.b16 %v95
    %v400 = vunpack.c.l.b16 %v96
    %v401 = vunpack.c.l.b16 %v97
    %v402 = vunpack.c.l.b16 %v98
    %v403 = vunpack.c.l.b16 %v99
    %v404 = vunpack.c.l.b16 %v100
    %v405 = vunpack.c.l.b16 %v101
    %v406 = vunpack.c.l.b16 %v102
    %v407 = vunpack.c.l.b16 %v103
    %v408 = vunpack.c.l.b16 %v104
    %v409 = vunpack.c.l.b16 %v105
    %v410 = vunpack.c.l.b16 %v106
    %v411 = vunpack.c.l.b16 %v107
    %v412 = vunpack.c.l.b16 %v108
    %v413 = vunpack.c.l.b16 %v109
    %v414 = vunpack.c.l.b16 %v110
    %v415 = vunpack.c.l.b16 %v111
    %v416 = vunpack.c.l.b16 %v112
    %v417 = vunpack.c.l.b16 %v113
    %v418 = vunpack.c.l.b16 %v114
    %v419 = vunpack.c.l.b16 %v115
    %v420 = vunpack.c.l.b16 %v116
    %v421 = vunpack.c.l.b16 %v117
    %v422 = vunpack.c.l.b16 %v118
    %v423 = vunpack.c.l.b16 %v119
    %v424 = vunpack.c.l.b16 %v120
    %v425 = vunpack.c.l.b16 %v121
    %v426 = vunpack.c.l.b16 %v122
    %v427 = vunpack.c.l.b16 %v123
    %v428 = vunpack.c.l.b16 %v124
    %v429 = vunpack.c.l.b16 %v125
    %v430 = vunpack.c.l.b16 %v126
    %v431 = vunpack.c.l.b16 %v127
    %v432 = vunpack.c.l.b16 %v128
    %v433 = vunpack.c.l.b16 %v129
    %v434 = vunpack.c.l.b16 %v130
    %v435 = vunpack.c.l.b16 %v131
    %v436 = vunpack.c.l.b16 %v132
    %v437 = vunpack.c.l.b16 %v133
    %v438 = vunpack.c.l.b16 %v134
    %v439 = vunpack.c.l.b16 %v135
    %v440 = vunpack.c.l.b16 %v136
    %v441 = vunpack.c.l.b16 %v137
    %v442 = vunpack.c.l.b16 %v138
    %v443 = vunpack.c.l.b16 %v139
    %v444 = vunpack.c.l.b16 %v140
    %v445 = vunpack.c.l.b16 %v141
    %v446 = vunpack.c.l.b16 %v142
    %v447 = vunpack.c.l.b16 %v143
    %v448 = vunpack.c.l.b16 %v144
    %v449 = vunpack.c.l.b16 %v145
    %v450 = vpack.c.b16 %v323, %v322
    %v451 = vpack.c.b16 %v325, %v324
    %v452 = vpack.c.b16 %v327, %v326
    %v453 = vpack.c.b16 %v329, %v328
    %v454 = vpack.c.b16 %v331, %v330
    %v455 = vpack.c.b16 %v333, %v332
    %v456 = vpack.c.b16 %v335, %v334
    %v457 = vpack.c.b16 %v337, %v336
    %v458 = vpack.c.b16 %v339, %v338
    %v459 = vpack.c.b16 %v341, %v340
    %v460 = vpack.c.b16 %v343, %v342
    %v461 = vpack.c.b16 %v345, %v344
    %v462 = vpack.c.b16 %v347, %v346
    %v463 = vpack.c.b16 %v349, %v348
    %v464 = vpack.c.b16 %v351, %v350
    %v465 = vpack.c.b16 %v353, %v352
    %v466 = vpack.c.b16 %v355, %v354
    %v467 = vpack.c.b16 %v357, %v356
    %v468 = vpack.c.b16 %v359, %v358
    %v469 = vpack.c.b16 %v361, %v360
    %v470 = vpack.c.b16 %v363, %v362
    %v471 = vpack.c.b16 %v365, %v364
    %v472 = vpack.c.b16 %v367, %v366
    %v473 = vpack.c.b16 %v369, %v368
    %v474 = vpack.c.b16 %v371, %v370
    %v475 = vpack.c.b16 %v373, %v372
    %v476 = vpack.c.b16 %v375, %v374
    %v477 = vpack.c.b16 %v377, %v376
    %v478 = vpack.c.b16 %v379, %v378
    %v479 = vpack.c.b16 %v381, %v380
    %v480 = vpack.c.b16 %v383, %v382
    %v481 = vpack.c.b16 %v385, %v384
    %v482 = vpack.c.b16 %v387, %v386
    %v483 = vpack.c.b16 %v389, %v388
    %v484 = vpack.c.b16 %v391, %v390
    %v485 = vpack.c.b16 %v393, %v392
    %v486 = vpack.c.b16 %v395, %v394
    %v487 = vpack.c.b16 %v397, %v396
    %v488 = vpack.c.b16 %v399, %v398
    %v489 = vpack.c.b16 %v401, %v400
    %v490 = vpack.c.b16 %v403, %v402
    %v491 = vpack.c.b16 %v405, %v404
    %v492 = vpack.c.b16 %v407, %v406
    %v493 = vpack.c.b16 %v409, %v408
    %v494 = vpack.c.b16 %v411, %v410
    %v495 = vpack.c.b16 %v413, %v412
    %v496 = vpack.c.b16 %v415, %v414
    %v497 = vpack.c.b16 %v417, %v416
    %v498 = vpack.c.b16 %v419, %v418
    %v499 = vpack.c.b16 %v421, %v420
    %v500 = vpack.c.b16 %v423, %v422
    %v501 = vpack.c.b16 %v425, %v424
    %v502 = vpack.c.b16 %v427, %v426
    %v503 = vpack.c.b16 %v429, %v428
    %v504 = vpack.c.b16 %v431, %v430
    %v505 = vpack.c.b16 %v433, %v432
    %v506 = vpack.c.b16 %v435, %v434
    %v507 = vpack.c.b16 %v437, %v436
    %v508 = vpack.c.b16 %v439, %v438
    %v509 = vpack.c.b16 %v441, %v440
    %v510 = vpack.c.b16 %v443, %v442
    %v511 = vpack.c.b16 %v445, %v444
    %v512 = vpack.c.b16 %v447, %v446
    %v513 = vpack.c.b16 %v449, %v448
    %578 = vmatprep.subr.bf16.mxu0 0
    %579 = vmatpush1.bf16.xpose.msra.mxu0 %v450
    %580 = vmatprep.subr.bf16.mxu0 0
    %581 = vmatpush1.bf16.xpose.msra.mxu0 %v451
    %582 = vmatprep.subr.bf16.mxu0 0
    %583 = vmatpush1.bf16.xpose.msra.mxu0 %v452
    %584 = vmatprep.subr.bf16.mxu0 0
    %585 = vmatpush1.bf16.xpose.msra.mxu0 %v453
    %586 = vmatprep.subr.bf16.mxu0 0
    %587 = vmatpush1.bf16.xpose.msra.mxu0 %v454
    %588 = vmatprep.subr.bf16.mxu0 0
    %589 = vmatpush1.bf16.xpose.msra.mxu0 %v455
    %590 = vmatprep.subr.bf16.mxu0 0
    %591 = vmatpush1.bf16.xpose.msra.mxu0 %v456
    %592 = vmatprep.subr.bf16.mxu0 0
    %593 = vmatpush1.bf16.xpose.msra.mxu0 %v457
    %594 = vmatprep.subr.bf16.mxu0 0
    %595 = vmatpush1.bf16.xpose.msra.mxu0 %v458
    %596 = vmatprep.subr.bf16.mxu0 0
    %597 = vmatpush1.bf16.xpose.msra.mxu0 %v459
    %598 = vmatprep.subr.bf16.mxu0 0
    %599 = vmatpush1.bf16.xpose.msra.mxu0 %v460
    %600 = vmatprep.subr.bf16.mxu0 0
    %601 = vmatpush1.bf16.xpose.msra.mxu0 %v461
    %602 = vmatprep.subr.bf16.mxu0 0
    %603 = vmatpush1.bf16.xpose.msra.mxu0 %v462
    %604 = vmatprep.subr.bf16.mxu0 0
    %605 = vmatpush1.bf16.xpose.msra.mxu0 %v463
    %606 = vmatprep.subr.bf16.mxu0 0
    %607 = vmatpush1.bf16.xpose.msra.mxu0 %v464
    %608 = vmatprep.subr.bf16.mxu0 0
    %609 = vmatpush1.bf16.xpose.msra.mxu0 %v465
    %610 = vmatprep.mubr.bf16.mxu0 0
    %611 = vmatmul.mubr.bf16.gmra.mrb[0].mxu0 %v192
    %v612 = vpop.f32.mrb[0].mxu0
    %v613 = vadd.f32 %v151, %v612
    %v614 = vpop.f32.mrb[0].mxu0
    %v615 = vadd.f32 %v155, %v614
    %v616 = vpop.f32.mrb[0].mxu0
    %v617 = vadd.f32 %v151, %v616
    %v618 = vpop.f32.mrb[0].mxu0
    %v619 = vadd.f32 %v155, %v618
    %620 = vdwg.mxu0
    %621 = vmatprep.subr.bf16.mxu0 0
    %622 = vmatpush1.bf16.xpose.msra.mxu0 %v466
    %623 = vmatprep.subr.bf16.mxu0 0
    %624 = vmatpush1.bf16.xpose.msra.mxu0 %v467
    %625 = vmatprep.subr.bf16.mxu0 0
    %626 = vmatpush1.bf16.xpose.msra.mxu0 %v468
    %627 = vmatprep.subr.bf16.mxu0 0
    %628 = vmatpush1.bf16.xpose.msra.mxu0 %v469
    %629 = vmatprep.subr.bf16.mxu0 0
    %630 = vmatpush1.bf16.xpose.msra.mxu0 %v470
    %631 = vmatprep.subr.bf16.mxu0 0
    %632 = vmatpush1.bf16.xpose.msra.mxu0 %v471
    %633 = vmatprep.subr.bf16.mxu0 0
    %634 = vmatpush1.bf16.xpose.msra.mxu0 %v472
    %635 = vmatprep.subr.bf16.mxu0 0
    %636 = vmatpush1.bf16.xpose.msra.mxu0 %v473
    %637 = vmatprep.subr.bf16.mxu0 0
    %638 = vmatpush1.bf16.xpose.msra.mxu0 %v474
    %639 = vmatprep.subr.bf16.mxu0 0
    %640 = vmatpush1.bf16.xpose.msra.mxu0 %v475
    %641 = vmatprep.subr.bf16.mxu0 0
    %642 = vmatpush1.bf16.xpose.msra.mxu0 %v476
    %643 = vmatprep.subr.bf16.mxu0 0
    %644 = vmatpush1.bf16.xpose.msra.mxu0 %v477
    %645 = vmatprep.subr.bf16.mxu0 0
    %646 = vmatpush1.bf16.xpose.msra.mxu0 %v478
    %647 = vmatprep.subr.bf16.mxu0 0
    %648 = vmatpush1.bf16.xpose.msra.mxu0 %v479
    %649 = vmatprep.subr.bf16.mxu0 0
    %650 = vmatpush1.bf16.xpose.msra.mxu0 %v480
    %651 = vmatprep.subr.bf16.mxu0 0
    %652 = vmatpush1.bf16.xpose.msra.mxu0 %v481
    %653 = vmatprep.mubr.bf16.mxu0 0
    %654 = vmatmul.mubr.bf16.gmra.mrb[0].mxu0 %v192
    %v655 = vpop.f32.mrb[0].mxu0
    %v656 = vadd.f32 %v159, %v655
    %v657 = vpop.f32.mrb[0].mxu0
    %v658 = vadd.f32 %v163, %v657
    %v659 = vpop.f32.mrb[0].mxu0
    %v660 = vadd.f32 %v159, %v659
    %v661 = vpop.f32.mrb[0].mxu0
    %v662 = vadd.f32 %v163, %v661
    %663 = vdwg.mxu0
    %664 = vmatprep.subr.bf16.mxu0 0
    %665 = vmatpush1.bf16.xpose.msra.mxu0 %v482
    %666 = vmatprep.subr.bf16.mxu0 0
    %667 = vmatpush1.bf16.xpose.msra.mxu0 %v483
    %668 = vmatprep.subr.bf16.mxu0 0
    %669 = vmatpush1.bf16.xpose.msra.mxu0 %v484
    %670 = vmatprep.subr.bf16.mxu0 0
    %671 = vmatpush1.bf16.xpose.msra.mxu0 %v485
    %672 = vmatprep.subr.bf16.mxu0 0
    %673 = vmatpush1.bf16.xpose.msra.mxu0 %v486
    %674 = vmatprep.subr.bf16.mxu0 0
    %675 = vmatpush1.bf16.xpose.msra.mxu0 %v487
    %676 = vmatprep.subr.bf16.mxu0 0
    %677 = vmatpush1.bf16.xpose.msra.mxu0 %v488
    %678 = vmatprep.subr.bf16.mxu0 0
    %679 = vmatpush1.bf16.xpose.msra.mxu0 %v489
    %680 = vmatprep.subr.bf16.mxu0 0
    %681 = vmatpush1.bf16.xpose.msra.mxu0 %v490
    %682 = vmatprep.subr.bf16.mxu0 0
    %683 = vmatpush1.bf16.xpose.msra.mxu0 %v491
    %684 = vmatprep.subr.bf16.mxu0 0
    %685 = vmatpush1.bf16.xpose.msra.mxu0 %v492
    %686 = vmatprep.subr.bf16.mxu0 0
    %687 = vmatpush1.bf16.xpose.msra.mxu0 %v493
    %688 = vmatprep.subr.bf16.mxu0 0
    %689 = vmatpush1.bf16.xpose.msra.mxu0 %v494
    %690 = vmatprep.subr.bf16.mxu0 0
    %691 = vmatpush1.bf16.xpose.msra.mxu0 %v495
    %692 = vmatprep.subr.bf16.mxu0 0
    %693 = vmatpush1.bf16.xpose.msra.mxu0 %v496
    %694 = vmatprep.subr.bf16.mxu0 0
    %695 = vmatpush1.bf16.xpose.msra.mxu0 %v497
    %696 = vmatprep.mubr.bf16.mxu0 0
    %697 = vmatmul.mubr.bf16.gmra.mrb[0].mxu0 %v192
    %v698 = vpop.f32.mrb[0].mxu0
    %v699 = vadd.f32 %v167, %v698
    %v700 = vpop.f32.mrb[0].mxu0
    %v701 = vadd.f32 %v171, %v700
    %v702 = vpop.f32.mrb[0].mxu0
    %v703 = vadd.f32 %v167, %v702
    %v704 = vpop.f32.mrb[0].mxu0
    %v705 = vadd.f32 %v171, %v704
    %706 = vdwg.mxu0
    %707 = vmatprep.subr.bf16.mxu0 0
    %708 = vmatpush1.bf16.xpose.msra.mxu0 %v498
    %709 = vmatprep.subr.bf16.mxu0 0
    %710 = vmatpush1.bf16.xpose.msra.mxu0 %v499
    %711 = vmatprep.subr.bf16.mxu0 0
    %712 = vmatpush1.bf16.xpose.msra.mxu0 %v500
    %713 = vmatprep.subr.bf16.mxu0 0
    %714 = vmatpush1.bf16.xpose.msra.mxu0 %v501
    %715 = vmatprep.subr.bf16.mxu0 0
    %716 = vmatpush1.bf16.xpose.msra.mxu0 %v502
    %717 = vmatprep.subr.bf16.mxu0 0
    %718 = vmatpush1.bf16.xpose.msra.mxu0 %v503
    %719 = vmatprep.subr.bf16.mxu0 0
    %720 = vmatpush1.bf16.xpose.msra.mxu0 %v504
    %721 = vmatprep.subr.bf16.mxu0 0
    %722 = vmatpush1.bf16.xpose.msra.mxu0 %v505
    %723 = vmatprep.subr.bf16.mxu0 0
    %724 = vmatpush1.bf16.xpose.msra.mxu0 %v506
    %725 = vmatprep.subr.bf16.mxu0 0
    %726 = vmatpush1.bf16.xpose.msra.mxu0 %v507
    %727 = vmatprep.subr.bf16.mxu0 0
    %728 = vmatpush1.bf16.xpose.msra.mxu0 %v508
    %729 = vmatprep.subr.bf16.mxu0 0
    %730 = vmatpush1.bf16.xpose.msra.mxu0 %v509
    %731 = vmatprep.subr.bf16.mxu0 0
    %732 = vmatpush1.bf16.xpose.msra.mxu0 %v510
    %733 = vmatprep.subr.bf16.mxu0 0
    %734 = vmatpush1.bf16.xpose.msra.mxu0 %v511
    %735 = vmatprep.subr.bf16.mxu0 0
    %736 = vmatpush1.bf16.xpose.msra.mxu0 %v512
    %737 = vmatprep.subr.bf16.mxu0 0
    %738 = vmatpush1.bf16.xpose.msra.mxu0 %v513
    %739 = vmatprep.mubr.bf16.mxu0 0
    %740 = vmatmul.mubr.bf16.gmra.mrb[0].mxu0 %v192
    %v741 = vpop.f32.mrb[0].mxu0
    %v742 = vadd.f32 %v175, %v741
    %v743 = vpop.f32.mrb[0].mxu0
    %v744 = vadd.f32 %v179, %v743
    %v745 = vpop.f32.mrb[0].mxu0
    %v746 = vadd.f32 %v175, %v745
    %v747 = vpop.f32.mrb[0].mxu0
    %v748 = vadd.f32 %v179, %v747
    %749 = vdwg.mxu0
    %v750 = vmul.f32 %v613, 0.5
    %v751 = vmul.f32 %v615, 0.5
    %v752 = vmul.f32 %v656, 0.5
    %v753 = vmul.f32 %v658, 0.5
    %v754 = vmul.f32 %v699, 0.5
    %v755 = vmul.f32 %v701, 0.5
    %v756 = vmul.f32 %v742, 0.5
    %v757 = vmul.f32 %v744, 0.5
    %v758 = vmul.f32 %v617, 0.5
    %v759 = vmul.f32 %v619, 0.5
    %v760 = vmul.f32 %v660, 0.5
    %v761 = vmul.f32 %v662, 0.5
    %v762 = vmul.f32 %v703, 0.5
    %v763 = vmul.f32 %v705, 0.5
    %v764 = vmul.f32 %v746, 0.5
    %v765 = vmul.f32 %v748, 0.5
    %v766 = vtanh.pop %v750
    %v767 = vtanh.pop %v751
    %v768 = vtanh.pop %v752
    %v769 = vtanh.pop %v753
    %v770 = vtanh.pop %v754
    %v771 = vtanh.pop %v755
    %v772 = vtanh.pop %v756
    %v773 = vtanh.pop %v757
    %v774 = vtanh.pop %v758
    %v775 = vtanh.pop %v759
    %v776 = vtanh.pop %v760
    %v777 = vtanh.pop %v761
    %v778 = vtanh.pop %v762
    %v779 = vtanh.pop %v763
    %v780 = vtanh.pop %v764
    %v781 = vtanh.pop %v765
    %v782 = vmul.f32 %v766, 0.5
    %v783 = vmul.f32 %v767, 0.5
    %v784 = vmul.f32 %v768, 0.5
    %v785 = vmul.f32 %v769, 0.5
    %v786 = vmul.f32 %v770, 0.5
    %v787 = vmul.f32 %v771, 0.5
    %v788 = vmul.f32 %v772, 0.5
    %v789 = vmul.f32 %v773, 0.5
    %v790 = vmul.f32 %v774, 0.5
    %v791 = vmul.f32 %v775, 0.5
    %v792 = vmul.f32 %v776, 0.5
    %v793 = vmul.f32 %v777, 0.5
    %v794 = vmul.f32 %v778, 0.5
    %v795 = vmul.f32 %v779, 0.5
    %v796 = vmul.f32 %v780, 0.5
    %v797 = vmul.f32 %v781, 0.5
    %v798 = vadd.f32 %v782, 0.5
    %v799 = vadd.f32 %v783, 0.5
    %v800 = vadd.f32 %v784, 0.5
    %v801 = vadd.f32 %v785, 0.5
    %v802 = vadd.f32 %v786, 0.5
    %v803 = vadd.f32 %v787, 0.5
    %v804 = vadd.f32 %v788, 0.5
    %v805 = vadd.f32 %v789, 0.5
    %v806 = vadd.f32 %v790, 0.5
    %v807 = vadd.f32 %v791, 0.5
    %v808 = vadd.f32 %v792, 0.5
    %v809 = vadd.f32 %v793, 0.5
    %v810 = vadd.f32 %v794, 0.5
    %v811 = vadd.f32 %v795, 0.5
    %v812 = vadd.f32 %v796, 0.5
    %v813 = vadd.f32 %v797, 0.5
    %v814 = vpack.c.bf16 %v806, %v798
    %v815 = vpack.c.bf16 %v807, %v799
    %v816 = vpack.c.bf16 %v808, %v800
    %v817 = vpack.c.bf16 %v809, %v801
    %v818 = vpack.c.bf16 %v810, %v802
    %v819 = vpack.c.bf16 %v811, %v803
    %v820 = vpack.c.bf16 %v812, %v804
    %v821 = vpack.c.bf16 %v813, %v805
    %v830 = vunpack.c.l.b16 %v814
    %v831 = vunpack.c.l.b16 %v815
    %v832 = vunpack.c.l.b16 %v816
    %v833 = vunpack.c.l.b16 %v817
    %v834 = vunpack.c.l.b16 %v818
    %v835 = vunpack.c.l.b16 %v819
    %v836 = vunpack.c.l.b16 %v820
    %v837 = vunpack.c.l.b16 %v821
    %v838 = vunpack.c.h.b16 %v814
    %v839 = vunpack.c.h.b16 %v815
    %v840 = vunpack.c.h.b16 %v816
    %v841 = vunpack.c.h.b16 %v817
    %v842 = vunpack.c.h.b16 %v818
    %v843 = vunpack.c.h.b16 %v819
    %v844 = vunpack.c.h.b16 %v820
    %v845 = vunpack.c.h.b16 %v821
    %v846 = vpack.c.b16 %v831, %v830
    %v847 = vpack.c.b16 %v833, %v832
    %v848 = vpack.c.b16 %v835, %v834
    %v849 = vpack.c.b16 %v837, %v836
    %v850 = vpack.c.b16 %v839, %v838
    %v851 = vpack.c.b16 %v841, %v840
    %v852 = vpack.c.b16 %v843, %v842
    %v853 = vpack.c.b16 %v845, %v844
    %862 = vst [vmem:[#allocation2] sm:$0xff] %v846
    %863 = vst [vmem:[#allocation2 + $0x8] sm:$0xff] %v847
    %864 = vst [vmem:[#allocation2 + $0x10] sm:$0xff] %v848
    %865 = vst [vmem:[#allocation2 + $0x18] sm:$0xff] %v849
    %866 = vst [vmem:[#allocation2 + $0x20] sm:$0xff] %v850
    %867 = vst [vmem:[#allocation2 + $0x28] sm:$0xff] %v851
    %868 = vst [vmem:[#allocation2 + $0x30] sm:$0xff] %v852
    %869 = vst [vmem:[#allocation2 + $0x38] sm:$0xff] %v853
    // Predicated region
    $region14: #{rotate3d_forward.3} parent=1 // pred_check
      _
    $region15: #{rotate3d_forward.3} parent=1 // pred_check_branch
      %871 = sbr.rel (0) target = $region17
    $region16: #{rotate3d_forward.3} parent=1 // pred_region
      %s873 = ssub.s32 1024, 1024
      %874 = vsyncadd [#allocation3], %s873
      %s875 = sshll.u32 [#allocation2], 4
      %s876 = int_to_ptr.vmem [resolvable:$true] %s875
      %881 = dma.vmem_to_hbm [thread:$0]  %s876, 1024, %s3, [#allocation3], 512, 512, 32
    $region17: #{rotate3d_forward.3} parent=1 // pred_fallthru
      _
    // Predicated region
    $region18: #{rotate3d_forward.3} parent=1 // pred_check
      _
    $region19: #{rotate3d_forward.3} parent=1 // pred_check_branch
      %883 = sbr.rel (0) target = $region21
    $region20: #{rotate3d_forward.3} parent=1 // pred_region
      %884 = dma.done [#allocation3], 1024
    $region21: #{rotate3d_forward.3} parent=1 // pred_fallthru
      _
    %885 = vsyncpa [#allocation3], 1

</llo_original>
